<compile_context>
chip_gen: v7x
topology: tpu7x:2x2x1
jax: 0.10.0
libtpu: 0.0.40
codegen_flags: <defaults>
</compile_context>

<pallas_src>
import functools

import jax
import jax.numpy as jnp
from jax.experimental import pallas as pl
from jax.experimental.pallas import tpu as pltpu

_VMEM_LIMIT = 48 * 1024 * 1024  # explicit budget with headroom (< v7x 64 MiB physical)


def _fit(dim, target, align):
    """Largest multiple of `align` that is <= target and divides `dim`; else the full dim."""
    if dim <= target:
        return dim
    t = (target // align) * align
    while t >= align:
        if dim % t == 0:
            return t
        t -= align
    return dim


def _layernorm(x, gamma, beta, eps=1e-5):
    """Single-pass LayerNorm: sum and sum-of-squares in one reduction pass."""
    n = x.shape[-1]
    s1 = jnp.sum(x, axis=-1, keepdims=True)
    s2 = jnp.sum(x * x, axis=-1, keepdims=True)
    mu = s1 * (1.0 / n)
    var = s2 * (1.0 / n) - mu * mu
    return (x - mu) * jax.lax.rsqrt(var + eps) * gamma + beta


# --------------------------------------------------------------------------------------
# Kernel 1: norm1 + Q/K/V projections over (B*S, H) row tiles.
# --------------------------------------------------------------------------------------
def _qkv_kernel(x_ref, g1_ref, be1_ref,
                wq_ref, bq_ref, wk_ref, bk_ref, wv_ref, bv_ref,
                q_ref, k_ref, v_ref):
    x = x_ref[...]                                           # (TM, H) f32
    h = x.shape[-1]
    xn = _layernorm(x, g1_ref[0], be1_ref[0]).astype(jnp.bfloat16)

    q = jnp.dot(xn, wq_ref[...], preferred_element_type=jnp.float32) + bq_ref[0]
    # Fold 1/sqrt(H) into Q so the (TQ, TKV) score tiles are never rescaled.
    q_ref[...] = (q * (1.0 / (h ** 0.5))).astype(q_ref.dtype)

    k = jnp.dot(xn, wk_ref[...], preferred_element_type=jnp.float32) + bk_ref[0]
    k_ref[...] = k.astype(k_ref.dtype)

    v = jnp.dot(xn, wv_ref[...], preferred_element_type=jnp.float32) + bv_ref[0]
    v_ref[...] = v.astype(v_ref.dtype)


def _qkv_call(x2, g1, be1, wq, bq, wk, bk, wv, bv, *, tm):
    bs, h = x2.shape
    row = pl.BlockSpec((tm, h), lambda i: (i, 0))
    wsp = pl.BlockSpec((h, h), lambda i: (0, 0))
    bsp = pl.BlockSpec((1, h), lambda i: (0, 0))
    return pl.pallas_call(
        _qkv_kernel,
        out_shape=tuple(jax.ShapeDtypeStruct((bs, h), jnp.bfloat16) for _ in range(3)),
        grid_spec=pltpu.PrefetchScalarGridSpec(
            num_scalar_prefetch=0,
            grid=(bs // tm,),
            in_specs=[row, bsp, bsp, wsp, bsp, wsp, bsp, wsp, bsp],
            out_specs=[row, row, row]),
        compiler_params=pltpu.CompilerParams(
            dimension_semantics=("parallel",),
            vmem_limit_bytes=_VMEM_LIMIT),
    )(x2, g1, be1, wq, bq, wk, bk, wv, bv)


# --------------------------------------------------------------------------------------
# Kernel 2: flash-style attention + residual.  grid = (B, n_q_tiles, n_kv_tiles).
# --------------------------------------------------------------------------------------
def _attn_kernel(x_ref, q_ref, k_ref, v_ref, o_ref, m_ref, l_ref, acc_ref):
    ki = pl.program_id(2)

    @pl.when(ki == 0)
    def _():
        m_ref[...] = jnp.full_like(m_ref, -jnp.inf)
        l_ref[...] = jnp.zeros_like(l_ref)
        acc_ref[...] = jnp.zeros_like(acc_ref)

    q = q_ref[0]                                             # (TQ, H)  bf16, pre-scaled
    k = k_ref[0]                                             # (TKV, H) bf16
    v = v_ref[0]                                             # (TKV, H) bf16

    # Contract on the H dim directly — no explicit k.T (avoids an XLU transpose pass).
    s = jax.lax.dot_general(q, k, (((1,), (1,)), ((), ())),
                            preferred_element_type=jnp.float32)   # (TQ, TKV) f32

    m_prev = m_ref[...]
    m_new = jnp.maximum(m_prev, jnp.max(s, axis=-1, keepdims=True))
    alpha = jnp.exp(m_prev - m_new)
    p = jnp.exp(s - m_new)
    l_ref[...] = alpha * l_ref[...] + jnp.sum(p, axis=-1, keepdims=True)
    acc_ref[...] = alpha * acc_ref[...] + jnp.dot(
        p.astype(jnp.bfloat16), v, preferred_element_type=jnp.float32)
    m_ref[...] = m_new

    @pl.when(ki == pl.num_programs(2) - 1)
    def _():
        inv_l = pl.reciprocal(l_ref[...], approx=True)       # EUP slot, ~free
        o_ref[0] = (x_ref[0] + acc_ref[...] * inv_l).astype(o_ref.dtype)


def _attn_call(x, q, k, v, *, tq, tkv):
    b, s, h = x.shape

    def q_map(bi, qi, ki):
        return (bi, qi, 0)

    def kv_map(bi, qi, ki):
        return (bi, ki, 0)

    return pl.pallas_call(
        _attn_kernel,
        out_shape=jax.ShapeDtypeStruct((b, s, h), jnp.float32),
        grid_spec=pltpu.PrefetchScalarGridSpec(
            num_scalar_prefetch=0,
            grid=(b, s // tq, s // tkv),
            in_specs=[pl.BlockSpec((1, tq, h), q_map),        # residual x
                      pl.BlockSpec((1, tq, h), q_map),        # q
                      pl.BlockSpec((1, tkv, h), kv_map),      # k
                      pl.BlockSpec((1, tkv, h), kv_map)],     # v
            out_specs=pl.BlockSpec((1, tq, h), q_map),
            scratch_shapes=[pltpu.VMEM((tq, 1), jnp.float32),     # running max
                            pltpu.VMEM((tq, 1), jnp.float32),     # running sum
                            pltpu.VMEM((tq, h), jnp.float32)]),   # output accumulator
        compiler_params=pltpu.CompilerParams(
            dimension_semantics=("parallel", "parallel", "arbitrary"),
            vmem_limit_bytes=_VMEM_LIMIT),
    )(x, q, k, v)


# --------------------------------------------------------------------------------------
# Kernel 3: norm2 + FFN (tiled over F, the 2H hidden dim) + residual.  grid = (nm, nf).
# --------------------------------------------------------------------------------------
def _ffn_kernel(x_ref, g2_ref, be2_ref, w1_ref, b1_ref, w2_ref, b2_ref,
                o_ref, xn_ref, acc_ref):
    fi = pl.program_id(1)

    @pl.when(fi == 0)
    def _():
        xn_ref[...] = _layernorm(x_ref[...], g2_ref[0], be2_ref[0]).astype(jnp.bfloat16)
        acc_ref[...] = jnp.zeros_like(acc_ref)

    h = jnp.dot(xn_ref[...], w1_ref[...], preferred_element_type=jnp.float32) + b1_ref[0]
    h = jnp.maximum(h, 0.0)                                   # ReLU is elementwise over F
    acc_ref[...] += jnp.dot(h.astype(jnp.bfloat16), w2_ref[...],
                            preferred_element_type=jnp.float32)

    @pl.when(fi == pl.num_programs(1) - 1)
    def _():
        o_ref[...] = (x_ref[...] + acc_ref[...] + b2_ref[0]).astype(o_ref.dtype)


def _ffn_call(x2, g2, be2, w1, b1, w2, b2, *, tm, tf):
    bs, h = x2.shape
    f = w1.shape[1]
    return pl.pallas_call(
        _ffn_kernel,
        out_shape=jax.ShapeDtypeStruct((bs, h), jnp.float32),
        grid_spec=pltpu.PrefetchScalarGridSpec(
            num_scalar_prefetch=0,
            grid=(bs // tm, f // tf),
            in_specs=[pl.BlockSpec((tm, h), lambda mi, fi: (mi, 0)),   # x1 (residual)
                      pl.BlockSpec((1, h), lambda mi, fi: (0, 0)),     # gamma2
                      pl.BlockSpec((1, h), lambda mi, fi: (0, 0)),     # beta2
                      pl.BlockSpec((h, tf), lambda mi, fi: (0, fi)),   # w1 chunk
                      pl.BlockSpec((1, tf), lambda mi, fi: (0, fi)),   # b1 chunk
                      pl.BlockSpec((tf, h), lambda mi, fi: (fi, 0)),   # w2 chunk
                      pl.BlockSpec((1, h), lambda mi, fi: (0, 0))],    # b2
            out_specs=pl.BlockSpec((tm, h), lambda mi, fi: (mi, 0)),
            scratch_shapes=[pltpu.VMEM((tm, h), jnp.bfloat16),         # xn2 (computed once)
                            pltpu.VMEM((tm, h), jnp.float32)]),        # y accumulator
        compiler_params=pltpu.CompilerParams(
            dimension_semantics=("parallel", "arbitrary"),
            vmem_limit_bytes=_VMEM_LIMIT),
    )(x2, g2, be2, w1, b1, w2, b2)


# --------------------------------------------------------------------------------------
# Wrapper: full EncoderLayer forward (eval mode — dropout is identity).
# --------------------------------------------------------------------------------------
@functools.partial(jax.jit, static_argnames=("tm", "tq", "tkv", "tf"))
def encoder_layer(x, params, *, tm=256, tq=256, tkv=512, tf=512):
    """x: (B, S, H) float32.  params: dict of weights (Linear weights pre-transposed (in,out))."""
    B, S, H = x.shape
    F = params["w1"].shape[1]
    BS = B * S

    tm = _fit(BS, tm, 8)
    tq = _fit(S, tq, 8)
    tkv = _fit(S, tkv, 8)
    tf = _fit(F, tf, 128)

    # bf16 operand copies for the MXU; accumulation stays f32 inside the kernels.
    bf = jnp.bfloat16
    wq, wk, wv = params["wq"].astype(bf), params["wk"].astype(bf), params["wv"].astype(bf)
    w1, w2 = params["w1"].astype(bf), params["w2"].astype(bf)

    x2 = x.reshape(BS, H)
    q, k, v = _qkv_call(x2, params["g1"], params["be1"],
                        wq, params["bq"], wk, params["bk"], wv, params["bv"], tm=tm)
    q = q.reshape(B, S, H)
    k = k.reshape(B, S, H)
    v = v.reshape(B, S, H)

    x1 = _attn_call(x, q, k, v, tq=tq, tkv=tkv)

    out = _ffn_call(x1.reshape(BS, H), params["g2"], params["be2"],
                    w1, params["b1"], w2, params["b2"], tm=tm, tf=tf)
    return out.reshape(B, S, H)


def _reference(x, p):
    """Plain-JAX f32 reference matching the PyTorch forward (eval mode)."""
    def ln(v, g, b, eps=1e-5):
        mu = jnp.mean(v, axis=-1, keepdims=True)
        var = jnp.mean((v - mu) ** 2, axis=-1, keepdims=True)
        return (v - mu) / jnp.sqrt(var + eps) * g + b
    H = x.shape[-1]
    xn = ln(x, p["g1"][0], p["be1"][0])
    q = xn @ p["wq"] + p["bq"][0]
    k = xn @ p["wk"] + p["bk"][0]
    v = xn @ p["wv"] + p["bv"][0]
    s = (q @ jnp.swapaxes(k, -2, -1)) / (H ** 0.5)
    a = jax.nn.softmax(s, axis=-1)
    x1 = x + a @ v
    xn2 = ln(x1, p["g2"][0], p["be2"][0])
    h = jax.nn.relu(xn2 @ p["w1"] + p["b1"][0])
    return x1 + h @ p["w2"] + p["b2"][0]


if __name__ == "__main__":
    B, S, H = 2, 8, 32
    F = 2 * H
    key = jax.random.PRNGKey(0)
    ks = jax.random.split(key, 16)

    def u(k, shape, scale):
        return jax.random.uniform(k, shape, jnp.float32, -scale, scale)

    sH, sF = 1.0 / (H ** 0.5), 1.0 / (F ** 0.5)
    params = {
        # Linear weights stored pre-transposed: (in, out), so y = x @ W + b.
        "wq": u(ks[0], (H, H), sH), "bq": u(ks[1], (1, H), sH),
        "wk": u(ks[2], (H, H), sH), "bk": u(ks[3], (1, H), sH),
        "wv": u(ks[4], (H, H), sH), "bv": u(ks[5], (1, H), sH),
        "w1": u(ks[6], (H, F), sH), "b1": u(ks[7], (1, F), sH),
        "w2": u(ks[8], (F, H), sF), "b2": u(ks[9], (1, H), sF),
        "g1": jnp.ones((1, H), jnp.float32), "be1": jnp.zeros((1, H), jnp.float32),
        "g2": jnp.ones((1, H), jnp.float32), "be2": jnp.zeros((1, H), jnp.float32),
    }

    x = jax.random.normal(ks[10], (B, S, H), jnp.float32)

    out = encoder_layer(x, params)
    jax.block_until_ready(out)

    ref = _reference(x, params)
    assert out.shape == (B, S, H)
    # bf16 MXU operands + approx reciprocal → compare against the f32 reference with a
    # bf16-appropriate tolerance.
    assert jnp.allclose(out, ref, atol=3e-2, rtol=3e-2)
    print("KERNEL_OK")
</pallas_src>

<mosaic_0001>
module attributes {stable_mosaic.version = 11 : i64} {
  func.func @_qkv_kernel(%arg0: i32, %arg1: memref<16x32xf32, #tpu.memory_space<vmem>>, %arg2: memref<1x32xf32, #tpu.memory_space<vmem>>, %arg3: memref<1x32xf32, #tpu.memory_space<vmem>>, %arg4: memref<32x32xbf16, #tpu.memory_space<vmem>>, %arg5: memref<1x32xf32, #tpu.memory_space<vmem>>, %arg6: memref<32x32xbf16, #tpu.memory_space<vmem>>, %arg7: memref<1x32xf32, #tpu.memory_space<vmem>>, %arg8: memref<32x32xbf16, #tpu.memory_space<vmem>>, %arg9: memref<1x32xf32, #tpu.memory_space<vmem>>, %arg10: memref<16x32xbf16, #tpu.memory_space<vmem>>, %arg11: memref<16x32xbf16, #tpu.memory_space<vmem>>, %arg12: memref<16x32xbf16, #tpu.memory_space<vmem>>) attributes {dimension_semantics = [#tpu.dimension_semantics<parallel>], iteration_bounds = array<i64: 1>, scalar_prefetch = 0 : i64, scratch_operands = 0 : i64, tpu.core_type = #tpu.core_type<tc>, window_params = [{transform_indices = @transform_0, window_bounds = array<i64: 16, 32>}, {pipeline_mode = #tpu.pipeline_mode<synchronous>, transform_indices = @transform_1, window_bounds = array<i64: 1, 32>}, {pipeline_mode = #tpu.pipeline_mode<synchronous>, transform_indices = @transform_2, window_bounds = array<i64: 1, 32>}, {pipeline_mode = #tpu.pipeline_mode<synchronous>, transform_indices = @transform_3, window_bounds = array<i64: 32, 32>}, {pipeline_mode = #tpu.pipeline_mode<synchronous>, transform_indices = @transform_4, window_bounds = array<i64: 1, 32>}, {pipeline_mode = #tpu.pipeline_mode<synchronous>, transform_indices = @transform_5, window_bounds = array<i64: 32, 32>}, {pipeline_mode = #tpu.pipeline_mode<synchronous>, transform_indices = @transform_6, window_bounds = array<i64: 1, 32>}, {pipeline_mode = #tpu.pipeline_mode<synchronous>, transform_indices = @transform_7, window_bounds = array<i64: 32, 32>}, {pipeline_mode = #tpu.pipeline_mode<synchronous>, transform_indices = @transform_8, window_bounds = array<i64: 1, 32>}, {transform_indices = @transform_9, window_bounds = array<i64: 16, 32>}, {transform_indices = @transform_10, window_bounds = array<i64: 16, 32>}, {transform_indices = @transform_11, window_bounds = array<i64: 16, 32>}]} {
    %c0 = arith.constant 0 : index
    %c0_0 = arith.constant 0 : index
    %0 = vector.load %arg1[%c0, %c0_0] : memref<16x32xf32, #tpu.memory_space<vmem>>, vector<16x32xf32>
    %c0_1 = arith.constant 0 : index
    %c0_2 = arith.constant 0 : index
    %1 = vector.load %arg2[%c0_1, %c0_2] : memref<1x32xf32, #tpu.memory_space<vmem>>, vector<1x32xf32>
    %2 = vector.shape_cast %1 : vector<1x32xf32> to vector<32xf32>
    %c0_3 = arith.constant 0 : index
    %c0_4 = arith.constant 0 : index
    %3 = vector.load %arg3[%c0_3, %c0_4] : memref<1x32xf32, #tpu.memory_space<vmem>>, vector<1x32xf32>
    %4 = vector.shape_cast %3 : vector<1x32xf32> to vector<32xf32>
    %cst = arith.constant dense<0.000000e+00> : vector<16xf32>
    %5 = vector.multi_reduction <add>, %0, %cst [1] : vector<16x32xf32> to vector<16xf32>
    %6 = vector.shape_cast %5 : vector<16xf32> to vector<16x1xf32>
    %7 = arith.mulf %0, %0 : vector<16x32xf32>
    %cst_5 = arith.constant dense<0.000000e+00> : vector<16xf32>
    %8 = vector.multi_reduction <add>, %7, %cst_5 [1] : vector<16x32xf32> to vector<16xf32>
    %9 = vector.shape_cast %8 : vector<16xf32> to vector<16x1xf32>
    %cst_6 = arith.constant 3.125000e-02 : f32
    %10 = vector.broadcast %cst_6 : f32 to vector<16x1xf32>
    %11 = arith.mulf %6, %10 : vector<16x1xf32>
    %cst_7 = arith.constant 3.125000e-02 : f32
    %12 = vector.broadcast %cst_7 : f32 to vector<16x1xf32>
    %13 = arith.mulf %9, %12 : vector<16x1xf32>
    %14 = arith.mulf %11, %11 : vector<16x1xf32>
    %15 = arith.subf %13, %14 : vector<16x1xf32>
    %16 = vector.broadcast %11 : vector<16x1xf32> to vector<16x32xf32>
    %17 = arith.subf %0, %16 : vector<16x32xf32>
    %cst_8 = arith.constant 9.99999974E-6 : f32
    %18 = vector.broadcast %cst_8 : f32 to vector<16x1xf32>
    %19 = arith.addf %15, %18 : vector<16x1xf32>
    %20 = math.rsqrt %19 : vector<16x1xf32>
    %21 = vector.broadcast %20 : vector<16x1xf32> to vector<16x32xf32>
    %22 = arith.mulf %17, %21 : vector<16x32xf32>
    %23 = vector.shape_cast %2 : vector<32xf32> to vector<1x32xf32>
    %24 = vector.broadcast %23 : vector<1x32xf32> to vector<16x32xf32>
    %25 = arith.mulf %22, %24 : vector<16x32xf32>
    %26 = vector.shape_cast %4 : vector<32xf32> to vector<1x32xf32>
    %27 = vector.broadcast %26 : vector<1x32xf32> to vector<16x32xf32>
    %28 = arith.addf %25, %27 : vector<16x32xf32>
    %29 = arith.truncf %28 : vector<16x32xf32> to vector<16x32xbf16>
    %c0_9 = arith.constant 0 : index
    %c0_10 = arith.constant 0 : index
    %30 = vector.load %arg4[%c0_9, %c0_10] : memref<32x32xbf16, #tpu.memory_space<vmem>>, vector<32x32xbf16>
    %cst_11 = arith.constant dense<0.000000e+00> : vector<16x32xf32>
    %31 = tpu.matmul %29, %30, %cst_11 {dimension_numbers = #tpu.dot_dimension_numbers<[1], [0], [0], [1], [0, 0, 1, 1], [], []>} : vector<16x32xbf16>, vector<32x32xbf16>, vector<16x32xf32> -> vector<16x32xf32>
    %c0_12 = arith.constant 0 : index
    %c0_13 = arith.constant 0 : index
    %32 = vector.load %arg5[%c0_12, %c0_13] : memref<1x32xf32, #tpu.memory_space<vmem>>, vector<1x32xf32>
    %33 = vector.shape_cast %32 : vector<1x32xf32> to vector<32xf32>
    %34 = vector.shape_cast %33 : vector<32xf32> to vector<1x32xf32>
    %35 = vector.broadcast %34 : vector<1x32xf32> to vector<16x32xf32>
    %36 = arith.addf %31, %35 : vector<16x32xf32>
    %cst_14 = arith.constant 0.176776692 : f32
    %37 = vector.broadcast %cst_14 : f32 to vector<16x32xf32>
    %38 = arith.mulf %36, %37 : vector<16x32xf32>
    %39 = arith.truncf %38 : vector<16x32xf32> to vector<16x32xbf16>
    %c0_15 = arith.constant 0 : index
    %c0_16 = arith.constant 0 : index
    %40 = vector.load %arg10[%c0_15, %c0_16] : memref<16x32xbf16, #tpu.memory_space<vmem>>, vector<16x32xbf16>
    tpu.vector_store %arg10[%c0_15, %c0_16], %39 {strides = array<i32>} : memref<16x32xbf16, #tpu.memory_space<vmem>>, vector<16x32xbf16>,
    %c0_17 = arith.constant 0 : index
    %c0_18 = arith.constant 0 : index
    %41 = vector.load %arg6[%c0_17, %c0_18] : memref<32x32xbf16, #tpu.memory_space<vmem>>, vector<32x32xbf16>
    %cst_19 = arith.constant dense<0.000000e+00> : vector<16x32xf32>
    %42 = tpu.matmul %29, %41, %cst_19 {dimension_numbers = #tpu.dot_dimension_numbers<[1], [0], [0], [1], [0, 0, 1, 1], [], []>} : vector<16x32xbf16>, vector<32x32xbf16>, vector<16x32xf32> -> vector<16x32xf32>
    %c0_20 = arith.constant 0 : index
    %c0_21 = arith.constant 0 : index
    %43 = vector.load %arg7[%c0_20, %c0_21] : memref<1x32xf32, #tpu.memory_space<vmem>>, vector<1x32xf32>
    %44 = vector.shape_cast %43 : vector<1x32xf32> to vector<32xf32>
    %45 = vector.shape_cast %44 : vector<32xf32> to vector<1x32xf32>
    %46 = vector.broadcast %45 : vector<1x32xf32> to vector<16x32xf32>
    %47 = arith.addf %42, %46 : vector<16x32xf32>
    %48 = arith.truncf %47 : vector<16x32xf32> to vector<16x32xbf16>
    %c0_22 = arith.constant 0 : index
    %c0_23 = arith.constant 0 : index
    %49 = vector.load %arg11[%c0_22, %c0_23] : memref<16x32xbf16, #tpu.memory_space<vmem>>, vector<16x32xbf16>
    tpu.vector_store %arg11[%c0_22, %c0_23], %48 {strides = array<i32>} : memref<16x32xbf16, #tpu.memory_space<vmem>>, vector<16x32xbf16>,
    %c0_24 = arith.constant 0 : index
    %c0_25 = arith.constant 0 : index
    %50 = vector.load %arg8[%c0_24, %c0_25] : memref<32x32xbf16, #tpu.memory_space<vmem>>, vector<32x32xbf16>
    %cst_26 = arith.constant dense<0.000000e+00> : vector<16x32xf32>
    %51 = tpu.matmul %29, %50, %cst_26 {dimension_numbers = #tpu.dot_dimension_numbers<[1], [0], [0], [1], [0, 0, 1, 1], [], []>} : vector<16x32xbf16>, vector<32x32xbf16>, vector<16x32xf32> -> vector<16x32xf32>
    %c0_27 = arith.constant 0 : index
    %c0_28 = arith.constant 0 : index
    %52 = vector.load %arg9[%c0_27, %c0_28] : memref<1x32xf32, #tpu.memory_space<vmem>>, vector<1x32xf32>
    %53 = vector.shape_cast %52 : vector<1x32xf32> to vector<32xf32>
    %54 = vector.shape_cast %53 : vector<32xf32> to vector<1x32xf32>
    %55 = vector.broadcast %54 : vector<1x32xf32> to vector<16x32xf32>
    %56 = arith.addf %51, %55 : vector<16x32xf32>
    %57 = arith.truncf %56 : vector<16x32xf32> to vector<16x32xbf16>
    %c0_29 = arith.constant 0 : index
    %c0_30 = arith.constant 0 : index
    %58 = vector.load %arg12[%c0_29, %c0_30] : memref<16x32xbf16, #tpu.memory_space<vmem>>, vector<16x32xbf16>
    tpu.vector_store %arg12[%c0_29, %c0_30], %57 {strides = array<i32>} : memref<16x32xbf16, #tpu.memory_space<vmem>>, vector<16x32xbf16>,
    return
  }
  func.func @transform_0(%arg0: i32) -> (i32, i32) {
    %c0_i32 = arith.constant 0 : i32
    %c0_i32_0 = arith.constant 0 : i32
    return %arg0, %c0_i32 : i32, i32
  }
  func.func @transform_1(%arg0: i32) -> (i32, i32) {
    %c0_i32 = arith.constant 0 : i32
    %c0_i32_0 = arith.constant 0 : i32
    %c0_i32_1 = arith.constant 0 : i32
    return %c0_i32, %c0_i32_0 : i32, i32
  }
  func.func @transform_2(%arg0: i32) -> (i32, i32) {
    %c0_i32 = arith.constant 0 : i32
    %c0_i32_0 = arith.constant 0 : i32
    %c0_i32_1 = arith.constant 0 : i32
    return %c0_i32, %c0_i32_0 : i32, i32
  }
  func.func @transform_3(%arg0: i32) -> (i32, i32) {
    %c0_i32 = arith.constant 0 : i32
    %c0_i32_0 = arith.constant 0 : i32
    %c0_i32_1 = arith.constant 0 : i32
    return %c0_i32, %c0_i32_0 : i32, i32
  }
  func.func @transform_4(%arg0: i32) -> (i32, i32) {
    %c0_i32 = arith.constant 0 : i32
    %c0_i32_0 = arith.constant 0 : i32
    %c0_i32_1 = arith.constant 0 : i32
    return %c0_i32, %c0_i32_0 : i32, i32
  }
  func.func @transform_5(%arg0: i32) -> (i32, i32) {
    %c0_i32 = arith.constant 0 : i32
    %c0_i32_0 = arith.constant 0 : i32
    %c0_i32_1 = arith.constant 0 : i32
    return %c0_i32, %c0_i32_0 : i32, i32
  }
  func.func @transform_6(%arg0: i32) -> (i32, i32) {
    %c0_i32 = arith.constant 0 : i32
    %c0_i32_0 = arith.constant 0 : i32
    %c0_i32_1 = arith.constant 0 : i32
    return %c0_i32, %c0_i32_0 : i32, i32
  }
  func.func @transform_7(%arg0: i32) -> (i32, i32) {
    %c0_i32 = arith.constant 0 : i32
    %c0_i32_0 = arith.constant 0 : i32
    %c0_i32_1 = arith.constant 0 : i32
    return %c0_i32, %c0_i32_0 : i32, i32
  }
  func.func @transform_8(%arg0: i32) -> (i32, i32) {
    %c0_i32 = arith.constant 0 : i32
    %c0_i32_0 = arith.constant 0 : i32
    %c0_i32_1 = arith.constant 0 : i32
    return %c0_i32, %c0_i32_0 : i32, i32
  }
  func.func @transform_9(%arg0: i32) -> (i32, i32) {
    %c0_i32 = arith.constant 0 : i32
    %c0_i32_0 = arith.constant 0 : i32
    return %arg0, %c0_i32 : i32, i32
  }
  func.func @transform_10(%arg0: i32) -> (i32, i32) {
    %c0_i32 = arith.constant 0 : i32
    %c0_i32_0 = arith.constant 0 : i32
    return %arg0, %c0_i32 : i32, i32
  }
  func.func @transform_11(%arg0: i32) -> (i32, i32) {
    %c0_i32 = arith.constant 0 : i32
    %c0_i32_0 = arith.constant 0 : i32
    return %arg0, %c0_i32 : i32, i32
  }
}

module attributes {stable_mosaic.version = 11 : i64} {
  func.func @_attn_kernel(%arg0: i32, %arg1: i32, %arg2: i32, %arg3: memref<1x8x32xf32, #tpu.memory_space<vmem>>, %arg4: memref<1x8x32xbf16, #tpu.memory_space<vmem>>, %arg5: memref<1x8x32xbf16, #tpu.memory_space<vmem>>, %arg6: memref<1x8x32xbf16, #tpu.memory_space<vmem>>, %arg7: memref<1x8x32xf32, #tpu.memory_space<vmem>>, %arg8: memref<8x1xf32, #tpu.memory_space<vmem>>, %arg9: memref<8x1xf32, #tpu.memory_space<vmem>>, %arg10: memref<8x32xf32, #tpu.memory_space<vmem>>) attributes {dimension_semantics = [#tpu.dimension_semantics<parallel>, #tpu.dimension_semantics<parallel>, #tpu.dimension_semantics<arbitrary>], iteration_bounds = array<i64: 2, 1, 1>, scalar_prefetch = 0 : i64, scratch_operands = 3 : i64, tpu.core_type = #tpu.core_type<tc>, window_params = [{transform_indices = @transform_0, window_bounds = array<i64: 1, 8, 32>}, {transform_indices = @transform_1, window_bounds = array<i64: 1, 8, 32>}, {transform_indices = @transform_2, window_bounds = array<i64: 1, 8, 32>}, {transform_indices = @transform_3, window_bounds = array<i64: 1, 8, 32>}, {transform_indices = @transform_4, window_bounds = array<i64: 1, 8, 32>}]} {
    %c0_i32 = arith.constant 0 : i32
    %0 = arith.cmpi eq, %arg2, %c0_i32 : i32
    %1 = arith.extui %0 : i1 to i32
    %c0_i32_0 = arith.constant 0 : i32
    %2 = arith.cmpi ne, %1, %c0_i32_0 : i32
    scf.if %2 {
      %cst_26 = arith.constant 0xFF800000 : f32
      %36 = vector.broadcast %cst_26 : f32 to vector<8x1xf32>
      %c0_27 = arith.constant 0 : index
      %c0_28 = arith.constant 0 : index
      %37 = vector.load %arg8[%c0_27, %c0_28] : memref<8x1xf32, #tpu.memory_space<vmem>>, vector<8x1xf32>
      tpu.vector_store %arg8[%c0_27, %c0_28], %36 {strides = array<i32>} : memref<8x1xf32, #tpu.memory_space<vmem>>, vector<8x1xf32>,
      %cst_29 = arith.constant 0.000000e+00 : f32
      %38 = vector.broadcast %cst_29 : f32 to vector<8x1xf32>
      %c0_30 = arith.constant 0 : index
      %c0_31 = arith.constant 0 : index
      %39 = vector.load %arg9[%c0_30, %c0_31] : memref<8x1xf32, #tpu.memory_space<vmem>>, vector<8x1xf32>
      tpu.vector_store %arg9[%c0_30, %c0_31], %38 {strides = array<i32>} : memref<8x1xf32, #tpu.memory_space<vmem>>, vector<8x1xf32>,
      %cst_32 = arith.constant 0.000000e+00 : f32
      %40 = vector.broadcast %cst_32 : f32 to vector<8x32xf32>
      %c0_33 = arith.constant 0 : index
      %c0_34 = arith.constant 0 : index
      %41 = vector.load %arg10[%c0_33, %c0_34] : memref<8x32xf32, #tpu.memory_space<vmem>>, vector<8x32xf32>
      tpu.vector_store %arg10[%c0_33, %c0_34], %40 {strides = array<i32>} : memref<8x32xf32, #tpu.memory_space<vmem>>, vector<8x32xf32>,
    } else {
    }
    %c0 = arith.constant 0 : index
    %c0_1 = arith.constant 0 : index
    %c0_2 = arith.constant 0 : index
    %3 = vector.load %arg4[%c0, %c0_1, %c0_2] : memref<1x8x32xbf16, #tpu.memory_space<vmem>>, vector<1x8x32xbf16>
    %4 = vector.shape_cast %3 : vector<1x8x32xbf16> to vector<8x32xbf16>
    %c0_3 = arith.constant 0 : index
    %c0_4 = arith.constant 0 : index
    %c0_5 = arith.constant 0 : index
    %5 = vector.load %arg5[%c0_3, %c0_4, %c0_5] : memref<1x8x32xbf16, #tpu.memory_space<vmem>>, vector<1x8x32xbf16>
    %6 = vector.shape_cast %5 : vector<1x8x32xbf16> to vector<8x32xbf16>
    %c0_6 = arith.constant 0 : index
    %c0_7 = arith.constant 0 : index
    %c0_8 = arith.constant 0 : index
    %7 = vector.load %arg6[%c0_6, %c0_7, %c0_8] : memref<1x8x32xbf16, #tpu.memory_space<vmem>>, vector<1x8x32xbf16>
    %8 = vector.shape_cast %7 : vector<1x8x32xbf16> to vector<8x32xbf16>
    %cst = arith.constant dense<0.000000e+00> : vector<8x8xf32>
    %9 = tpu.matmul %4, %6, %cst {dimension_numbers = #tpu.dot_dimension_numbers<[1], [1], [0], [0], [0, 0, 1, 0], [], []>} : vector<8x32xbf16>, vector<8x32xbf16>, vector<8x8xf32> -> vector<8x8xf32>
    %c0_9 = arith.constant 0 : index
    %c0_10 = arith.constant 0 : index
    %10 = vector.load %arg8[%c0_9, %c0_10] : memref<8x1xf32, #tpu.memory_space<vmem>>, vector<8x1xf32>
    %cst_11 = arith.constant dense<0xFF800000> : vector<8xf32>
    %11 = vector.multi_reduction <maximumf>, %9, %cst_11 [1] : vector<8x8xf32> to vector<8xf32>
    %12 = vector.shape_cast %11 : vector<8xf32> to vector<8x1xf32>
    %13 = arith.maximumf %10, %12 : vector<8x1xf32>
    %14 = arith.subf %10, %13 : vector<8x1xf32>
    %15 = math.exp %14 : vector<8x1xf32>
    %16 = vector.broadcast %13 : vector<8x1xf32> to vector<8x8xf32>
    %17 = arith.subf %9, %16 : vector<8x8xf32>
    %18 = math.exp %17 : vector<8x8xf32>
    %c0_12 = arith.constant 0 : index
    %c0_13 = arith.constant 0 : index
    %19 = vector.load %arg9[%c0_12, %c0_13] : memref<8x1xf32, #tpu.memory_space<vmem>>, vector<8x1xf32>
    %20 = arith.mulf %15, %19 : vector<8x1xf32>
    %cst_14 = arith.constant dense<0.000000e+00> : vector<8xf32>
    %21 = vector.multi_reduction <add>, %18, %cst_14 [1] : vector<8x8xf32> to vector<8xf32>
    %22 = vector.shape_cast %21 : vector<8xf32> to vector<8x1xf32>
    %23 = arith.addf %20, %22 : vector<8x1xf32>
    %c0_15 = arith.constant 0 : index
    %c0_16 = arith.constant 0 : index
    %24 = vector.load %arg9[%c0_15, %c0_16] : memref<8x1xf32, #tpu.memory_space<vmem>>, vector<8x1xf32>
    tpu.vector_store %arg9[%c0_15, %c0_16], %23 {strides = array<i32>} : memref<8x1xf32, #tpu.memory_space<vmem>>, vector<8x1xf32>,
    %c0_17 = arith.constant 0 : index
    %c0_18 = arith.constant 0 : index
    %25 = vector.load %arg10[%c0_17, %c0_18] : memref<8x32xf32, #tpu.memory_space<vmem>>, vector<8x32xf32>
    %26 = vector.broadcast %15 : vector<8x1xf32> to vector<8x32xf32>
    %27 = arith.mulf %26, %25 : vector<8x32xf32>
    %28 = arith.truncf %18 : vector<8x8xf32> to vector<8x8xbf16>
    %cst_19 = arith.constant dense<0.000000e+00> : vector<8x32xf32>
    %29 = tpu.matmul %28, %8, %cst_19 {dimension_numbers = #tpu.dot_dimension_numbers<[1], [0], [0], [1], [0, 0, 1, 1], [], []>} : vector<8x8xbf16>, vector<8x32xbf16>, vector<8x32xf32> -> vector<8x32xf32>
    %30 = arith.addf %27, %29 : vector<8x32xf32>
    %c0_20 = arith.constant 0 : index
    %c0_21 = arith.constant 0 : index
    %31 = vector.load %arg10[%c0_20, %c0_21] : memref<8x32xf32, #tpu.memory_space<vmem>>, vector<8x32xf32>
    tpu.vector_store %arg10[%c0_20, %c0_21], %30 {strides = array<i32>} : memref<8x32xf32, #tpu.memory_space<vmem>>, vector<8x32xf32>,
    %c0_22 = arith.constant 0 : index
    %c0_23 = arith.constant 0 : index
    %32 = vector.load %arg8[%c0_22, %c0_23] : memref<8x1xf32, #tpu.memory_space<vmem>>, vector<8x1xf32>
    tpu.vector_store %arg8[%c0_22, %c0_23], %13 {strides = array<i32>} : memref<8x1xf32, #tpu.memory_space<vmem>>, vector<8x1xf32>,
    %c0_i32_24 = arith.constant 0 : i32
    %33 = arith.cmpi eq, %arg2, %c0_i32_24 : i32
    %34 = arith.extui %33 : i1 to i32
    %c0_i32_25 = arith.constant 0 : i32
    %35 = arith.cmpi ne, %34, %c0_i32_25 : i32
    scf.if %35 {
      %c0_26 = arith.constant 0 : index
      %c0_27 = arith.constant 0 : index
      %36 = vector.load %arg9[%c0_26, %c0_27] : memref<8x1xf32, #tpu.memory_space<vmem>>, vector<8x1xf32>
      %37 = tpu.reciprocal %36 {approx = true} : vector<8x1xf32> -> vector<8x1xf32>
      %c0_28 = arith.constant 0 : index
      %c0_29 = arith.constant 0 : index
      %c0_30 = arith.constant 0 : index
      %38 = vector.load %arg3[%c0_28, %c0_29, %c0_30] : memref<1x8x32xf32, #tpu.memory_space<vmem>>, vector<1x8x32xf32>
      %39 = vector.shape_cast %38 : vector<1x8x32xf32> to vector<8x32xf32>
      %c0_31 = arith.constant 0 : index
      %c0_32 = arith.constant 0 : index
      %40 = vector.load %arg10[%c0_31, %c0_32] : memref<8x32xf32, #tpu.memory_space<vmem>>, vector<8x32xf32>
      %41 = vector.broadcast %37 : vector<8x1xf32> to vector<8x32xf32>
      %42 = arith.mulf %40, %41 : vector<8x32xf32>
      %43 = arith.addf %39, %42 : vector<8x32xf32>
      %c0_33 = arith.constant 0 : index
      %c0_34 = arith.constant 0 : index
      %c0_35 = arith.constant 0 : index
      %44 = vector.load %arg7[%c0_33, %c0_34, %c0_35] : memref<1x8x32xf32, #tpu.memory_space<vmem>>, vector<1x8x32xf32>
      %45 = vector.shape_cast %44 : vector<1x8x32xf32> to vector<8x32xf32>
      %46 = vector.shape_cast %43 : vector<8x32xf32> to vector<1x8x32xf32>
      tpu.vector_store %arg7[%c0_33, %c0_34, %c0_35], %46 {strides = array<i32>} : memref<1x8x32xf32, #tpu.memory_space<vmem>>, vector<1x8x32xf32>,
    } else {
    }
    return
  }
  func.func @transform_0(%arg0: i32, %arg1: i32, %arg2: i32) -> (i32, i32, i32) {
    %c0_i32 = arith.constant 0 : i32
    %c0_i32_0 = arith.constant 0 : i32
    return %arg0, %arg1, %c0_i32 : i32, i32, i32
  }
  func.func @transform_1(%arg0: i32, %arg1: i32, %arg2: i32) -> (i32, i32, i32) {
    %c0_i32 = arith.constant 0 : i32
    %c0_i32_0 = arith.constant 0 : i32
    return %arg0, %arg1, %c0_i32 : i32, i32, i32
  }
  func.func @transform_2(%arg0: i32, %arg1: i32, %arg2: i32) -> (i32, i32, i32) {
    %c0_i32 = arith.constant 0 : i32
    %c0_i32_0 = arith.constant 0 : i32
    return %arg0, %arg2, %c0_i32 : i32, i32, i32
  }
  func.func @transform_3(%arg0: i32, %arg1: i32, %arg2: i32) -> (i32, i32, i32) {
    %c0_i32 = arith.constant 0 : i32
    %c0_i32_0 = arith.constant 0 : i32
    return %arg0, %arg2, %c0_i32 : i32, i32, i32
  }
  func.func @transform_4(%arg0: i32, %arg1: i32, %arg2: i32) -> (i32, i32, i32) {
    %c0_i32 = arith.constant 0 : i32
    %c0_i32_0 = arith.constant 0 : i32
    return %arg0, %arg1, %c0_i32 : i32, i32, i32
  }
}

module attributes {stable_mosaic.version = 11 : i64} {
  func.func @_ffn_kernel(%arg0: i32, %arg1: i32, %arg2: memref<16x32xf32, #tpu.memory_space<vmem>>, %arg3: memref<1x32xf32, #tpu.memory_space<vmem>>, %arg4: memref<1x32xf32, #tpu.memory_space<vmem>>, %arg5: memref<32x64xbf16, #tpu.memory_space<vmem>>, %arg6: memref<1x64xf32, #tpu.memory_space<vmem>>, %arg7: memref<64x32xbf16, #tpu.memory_space<vmem>>, %arg8: memref<1x32xf32, #tpu.memory_space<vmem>>, %arg9: memref<16x32xf32, #tpu.memory_space<vmem>>, %arg10: memref<16x32xbf16, #tpu.memory_space<vmem>>, %arg11: memref<16x32xf32, #tpu.memory_space<vmem>>) attributes {dimension_semantics = [#tpu.dimension_semantics<parallel>, #tpu.dimension_semantics<arbitrary>], iteration_bounds = array<i64: 1, 1>, scalar_prefetch = 0 : i64, scratch_operands = 2 : i64, tpu.core_type = #tpu.core_type<tc>, window_params = [{transform_indices = @transform_0, window_bounds = array<i64: 16, 32>}, {pipeline_mode = #tpu.pipeline_mode<synchronous>, transform_indices = @transform_1, window_bounds = array<i64: 1, 32>}, {pipeline_mode = #tpu.pipeline_mode<synchronous>, transform_indices = @transform_2, window_bounds = array<i64: 1, 32>}, {transform_indices = @transform_3, window_bounds = array<i64: 32, 64>}, {transform_indices = @transform_4, window_bounds = array<i64: 1, 64>}, {transform_indices = @transform_5, window_bounds = array<i64: 64, 32>}, {pipeline_mode = #tpu.pipeline_mode<synchronous>, transform_indices = @transform_6, window_bounds = array<i64: 1, 32>}, {transform_indices = @transform_7, window_bounds = array<i64: 16, 32>}]} {
    %c0_i32 = arith.constant 0 : i32
    %0 = arith.cmpi eq, %arg1, %c0_i32 : i32
    %1 = arith.extui %0 : i1 to i32
    %c0_i32_0 = arith.constant 0 : i32
    %2 = arith.cmpi ne, %1, %c0_i32_0 : i32
    scf.if %2 {
      %c0_16 = arith.constant 0 : index
      %c0_17 = arith.constant 0 : index
      %22 = vector.load %arg2[%c0_16, %c0_17] : memref<16x32xf32, #tpu.memory_space<vmem>>, vector<16x32xf32>
      %c0_18 = arith.constant 0 : index
      %c0_19 = arith.constant 0 : index
      %23 = vector.load %arg3[%c0_18, %c0_19] : memref<1x32xf32, #tpu.memory_space<vmem>>, vector<1x32xf32>
      %24 = vector.shape_cast %23 : vector<1x32xf32> to vector<32xf32>
      %c0_20 = arith.constant 0 : index
      %c0_21 = arith.constant 0 : index
      %25 = vector.load %arg4[%c0_20, %c0_21] : memref<1x32xf32, #tpu.memory_space<vmem>>, vector<1x32xf32>
      %26 = vector.shape_cast %25 : vector<1x32xf32> to vector<32xf32>
      %cst_22 = arith.constant dense<0.000000e+00> : vector<16xf32>
      %27 = vector.multi_reduction <add>, %22, %cst_22 [1] : vector<16x32xf32> to vector<16xf32>
      %28 = vector.shape_cast %27 : vector<16xf32> to vector<16x1xf32>
      %29 = arith.mulf %22, %22 : vector<16x32xf32>
      %cst_23 = arith.constant dense<0.000000e+00> : vector<16xf32>
      %30 = vector.multi_reduction <add>, %29, %cst_23 [1] : vector<16x32xf32> to vector<16xf32>
      %31 = vector.shape_cast %30 : vector<16xf32> to vector<16x1xf32>
      %cst_24 = arith.constant 3.125000e-02 : f32
      %32 = vector.broadcast %cst_24 : f32 to vector<16x1xf32>
      %33 = arith.mulf %28, %32 : vector<16x1xf32>
      %cst_25 = arith.constant 3.125000e-02 : f32
      %34 = vector.broadcast %cst_25 : f32 to vector<16x1xf32>
      %35 = arith.mulf %31, %34 : vector<16x1xf32>
      %36 = arith.mulf %33, %33 : vector<16x1xf32>
      %37 = arith.subf %35, %36 : vector<16x1xf32>
      %38 = vector.broadcast %33 : vector<16x1xf32> to vector<16x32xf32>
      %39 = arith.subf %22, %38 : vector<16x32xf32>
      %cst_26 = arith.constant 9.99999974E-6 : f32
      %40 = vector.broadcast %cst_26 : f32 to vector<16x1xf32>
      %41 = arith.addf %37, %40 : vector<16x1xf32>
      %42 = math.rsqrt %41 : vector<16x1xf32>
      %43 = vector.broadcast %42 : vector<16x1xf32> to vector<16x32xf32>
      %44 = arith.mulf %39, %43 : vector<16x32xf32>
      %45 = vector.shape_cast %24 : vector<32xf32> to vector<1x32xf32>
      %46 = vector.broadcast %45 : vector<1x32xf32> to vector<16x32xf32>
      %47 = arith.mulf %44, %46 : vector<16x32xf32>
      %48 = vector.shape_cast %26 : vector<32xf32> to vector<1x32xf32>
      %49 = vector.broadcast %48 : vector<1x32xf32> to vector<16x32xf32>
      %50 = arith.addf %47, %49 : vector<16x32xf32>
      %51 = arith.truncf %50 : vector<16x32xf32> to vector<16x32xbf16>
      %c0_27 = arith.constant 0 : index
      %c0_28 = arith.constant 0 : index
      %52 = vector.load %arg10[%c0_27, %c0_28] : memref<16x32xbf16, #tpu.memory_space<vmem>>, vector<16x32xbf16>
      tpu.vector_store %arg10[%c0_27, %c0_28], %51 {strides = array<i32>} : memref<16x32xbf16, #tpu.memory_space<vmem>>, vector<16x32xbf16>,
      %cst_29 = arith.constant 0.000000e+00 : f32
      %53 = vector.broadcast %cst_29 : f32 to vector<16x32xf32>
      %c0_30 = arith.constant 0 : index
      %c0_31 = arith.constant 0 : index
      %54 = vector.load %arg11[%c0_30, %c0_31] : memref<16x32xf32, #tpu.memory_space<vmem>>, vector<16x32xf32>
      tpu.vector_store %arg11[%c0_30, %c0_31], %53 {strides = array<i32>} : memref<16x32xf32, #tpu.memory_space<vmem>>, vector<16x32xf32>,
    } else {
    }
    %c0 = arith.constant 0 : index
    %c0_1 = arith.constant 0 : index
    %3 = vector.load %arg10[%c0, %c0_1] : memref<16x32xbf16, #tpu.memory_space<vmem>>, vector<16x32xbf16>
    %c0_2 = arith.constant 0 : index
    %c0_3 = arith.constant 0 : index
    %4 = vector.load %arg5[%c0_2, %c0_3] : memref<32x64xbf16, #tpu.memory_space<vmem>>, vector<32x64xbf16>
    %cst = arith.constant dense<0.000000e+00> : vector<16x64xf32>
    %5 = tpu.matmul %3, %4, %cst {dimension_numbers = #tpu.dot_dimension_numbers<[1], [0], [0], [1], [0, 0, 1, 1], [], []>} : vector<16x32xbf16>, vector<32x64xbf16>, vector<16x64xf32> -> vector<16x64xf32>
    %c0_4 = arith.constant 0 : index
    %c0_5 = arith.constant 0 : index
    %6 = vector.load %arg6[%c0_4, %c0_5] : memref<1x64xf32, #tpu.memory_space<vmem>>, vector<1x64xf32>
    %7 = vector.shape_cast %6 : vector<1x64xf32> to vector<64xf32>
    %8 = vector.shape_cast %7 : vector<64xf32> to vector<1x64xf32>
    %9 = vector.broadcast %8 : vector<1x64xf32> to vector<16x64xf32>
    %10 = arith.addf %5, %9 : vector<16x64xf32>
    %cst_6 = arith.constant 0.000000e+00 : f32
    %11 = vector.broadcast %cst_6 : f32 to vector<16x64xf32>
    %12 = arith.maximumf %10, %11 : vector<16x64xf32>
    %c0_7 = arith.constant 0 : index
    %c0_8 = arith.constant 0 : index
    %13 = vector.load %arg11[%c0_7, %c0_8] : memref<16x32xf32, #tpu.memory_space<vmem>>, vector<16x32xf32>
    %14 = arith.truncf %12 : vector<16x64xf32> to vector<16x64xbf16>
    %c0_9 = arith.constant 0 : index
    %c0_10 = arith.constant 0 : index
    %15 = vector.load %arg7[%c0_9, %c0_10] : memref<64x32xbf16, #tpu.memory_space<vmem>>, vector<64x32xbf16>
    %cst_11 = arith.constant dense<0.000000e+00> : vector<16x32xf32>
    %16 = tpu.matmul %14, %15, %cst_11 {dimension_numbers = #tpu.dot_dimension_numbers<[1], [0], [0], [1], [0, 0, 1, 1], [], []>} : vector<16x64xbf16>, vector<64x32xbf16>, vector<16x32xf32> -> vector<16x32xf32>
    %17 = arith.addf %13, %16 : vector<16x32xf32>
    %c0_12 = arith.constant 0 : index
    %c0_13 = arith.constant 0 : index
    %18 = vector.load %arg11[%c0_12, %c0_13] : memref<16x32xf32, #tpu.memory_space<vmem>>, vector<16x32xf32>
    tpu.vector_store %arg11[%c0_12, %c0_13], %17 {strides = array<i32>} : memref<16x32xf32, #tpu.memory_space<vmem>>, vector<16x32xf32>,
    %c0_i32_14 = arith.constant 0 : i32
    %19 = arith.cmpi eq, %arg1, %c0_i32_14 : i32
    %20 = arith.extui %19 : i1 to i32
    %c0_i32_15 = arith.constant 0 : i32
    %21 = arith.cmpi ne, %20, %c0_i32_15 : i32
    scf.if %21 {
      %c0_16 = arith.constant 0 : index
      %c0_17 = arith.constant 0 : index
      %22 = vector.load %arg2[%c0_16, %c0_17] : memref<16x32xf32, #tpu.memory_space<vmem>>, vector<16x32xf32>
      %c0_18 = arith.constant 0 : index
      %c0_19 = arith.constant 0 : index
      %23 = vector.load %arg11[%c0_18, %c0_19] : memref<16x32xf32, #tpu.memory_space<vmem>>, vector<16x32xf32>
      %24 = arith.addf %22, %23 : vector<16x32xf32>
      %c0_20 = arith.constant 0 : index
      %c0_21 = arith.constant 0 : index
      %25 = vector.load %arg8[%c0_20, %c0_21] : memref<1x32xf32, #tpu.memory_space<vmem>>, vector<1x32xf32>
      %26 = vector.shape_cast %25 : vector<1x32xf32> to vector<32xf32>
      %27 = vector.shape_cast %26 : vector<32xf32> to vector<1x32xf32>
      %28 = vector.broadcast %27 : vector<1x32xf32> to vector<16x32xf32>
      %29 = arith.addf %24, %28 : vector<16x32xf32>
      %c0_22 = arith.constant 0 : index
      %c0_23 = arith.constant 0 : index
      %30 = vector.load %arg9[%c0_22, %c0_23] : memref<16x32xf32, #tpu.memory_space<vmem>>, vector<16x32xf32>
      tpu.vector_store %arg9[%c0_22, %c0_23], %29 {strides = array<i32>} : memref<16x32xf32, #tpu.memory_space<vmem>>, vector<16x32xf32>,
    } else {
    }
    return
  }
  func.func @transform_0(%arg0: i32, %arg1: i32) -> (i32, i32) {
    %c0_i32 = arith.constant 0 : i32
    %c0_i32_0 = arith.constant 0 : i32
    return %arg0, %c0_i32 : i32, i32
  }
  func.func @transform_1(%arg0: i32, %arg1: i32) -> (i32, i32) {
    %c0_i32 = arith.constant 0 : i32
    %c0_i32_0 = arith.constant 0 : i32
    %c0_i32_1 = arith.constant 0 : i32
    return %c0_i32, %c0_i32_0 : i32, i32
  }
  func.func @transform_2(%arg0: i32, %arg1: i32) -> (i32, i32) {
    %c0_i32 = arith.constant 0 : i32
    %c0_i32_0 = arith.constant 0 : i32
    %c0_i32_1 = arith.constant 0 : i32
    return %c0_i32, %c0_i32_0 : i32, i32
  }
  func.func @transform_3(%arg0: i32, %arg1: i32) -> (i32, i32) {
    %c0_i32 = arith.constant 0 : i32
    %c0_i32_0 = arith.constant 0 : i32
    return %c0_i32, %arg1 : i32, i32
  }
  func.func @transform_4(%arg0: i32, %arg1: i32) -> (i32, i32) {
    %c0_i32 = arith.constant 0 : i32
    %c0_i32_0 = arith.constant 0 : i32
    return %c0_i32, %arg1 : i32, i32
  }
  func.func @transform_5(%arg0: i32, %arg1: i32) -> (i32, i32) {
    %c0_i32 = arith.constant 0 : i32
    %c0_i32_0 = arith.constant 0 : i32
    return %arg1, %c0_i32 : i32, i32
  }
  func.func @transform_6(%arg0: i32, %arg1: i32) -> (i32, i32) {
    %c0_i32 = arith.constant 0 : i32
    %c0_i32_0 = arith.constant 0 : i32
    %c0_i32_1 = arith.constant 0 : i32
    return %c0_i32, %c0_i32_0 : i32, i32
  }
  func.func @transform_7(%arg0: i32, %arg1: i32) -> (i32, i32) {
    %c0_i32 = arith.constant 0 : i32
    %c0_i32_0 = arith.constant 0 : i32
    return %arg0, %c0_i32 : i32, i32
  }
}

</mosaic_0001>

<llo_original>
// kernel: encoder_layer.4
$region0: #{encoder_layer.4}
  #allocation0 [shape = 'u32[]', space=smem, size = 0x4, offset = 0x4, fixed_abs, tag = 'smem constant byte address 0x4 - core index']
  #allocation1 [shape = 'u32[144,128]{1,0:T(1,128)}', space=vmem, size = 0x12000, scoped, tag = 'internal scratch']
  #allocation2 [shape = 'f32[8,1]{1,0:T(8,128)}', space=vmem, size = 0x1000, scoped, tag = 'scratch operand']
  #allocation3 [shape = 'f32[8,1]{1,0:T(8,128)}', space=vmem, size = 0x1000, scoped, tag = 'scratch operand']
  #allocation4 [shape = 'f32[8,32]{1,0:T(8,128)}', space=vmem, size = 0x1000, scoped, tag = 'scratch operand']
  %s0 = inlined_call_operand.vmem [shape: f32[2,8,32], index: 0, kind: input, shape index: {}]
  %s1 = inlined_call_operand.vmem [shape: bf16[2,8,32], index: 1, kind: input, shape index: {}]
  %s2 = inlined_call_operand.vmem [shape: bf16[2,8,32], index: 2, kind: input, shape index: {}]
  %s3 = inlined_call_operand.vmem [shape: bf16[2,8,32], index: 3, kind: input, shape index: {}]
  %s4 = inlined_call_operand.vmem [shape: f32[2,8,32], index: 4, kind: output, shape index: {}]
  %s5 = sld [smem:[#allocation0]]
  $region57: #{encoder_layer.4} parent=0
    _
  %s7 = ssub.s32 1, %s5
  %s8 = scalar_select 0, %s7, %s5
  loop: start=0, step=1, limit=4
  $region2: #{encoder_layer.4} parent=0 // loop_pre_header
    _
  $region3: #{encoder_layer.4} parent=0 // loop_header
    %s10 = sphi 0, %s14
    %p11 = scmp.ge.s32.totalorder %s10, 4
    %s17 = sphi 0, %s36
    %s18 = sphi 0, %s32
    %s19 = sphi 0, %s28
    %s20 = sphi 0, %s17
    %s21 = sphi 0, %s18
    %s22 = sphi 0, %s19
    %s23 = sphi 0, %s20
    %s24 = sphi 0, %s21
    %s25 = sphi 0, %s22
    %s41 = sphi 0, %s43
    %s44 = sphi 0, %s41
    %s45 = sphi 0, %s44
    %s61 = sphi 0, %s45
    %s69 = sphi 0, %s71
    %s72 = sphi 0, %s69
    %s73 = sphi 0, %s72
    %s89 = sphi 0, %s73
    %s97 = sphi 0, %s99
    %s100 = sphi 0, %s97
    %s101 = sphi 0, %s100
    %s117 = sphi 0, %s101
    %s125 = sphi 0, %s127
    %s128 = sphi 0, %s125
    %s129 = sphi 0, %s128
    %s145 = sphi 0, %s129
    %s153 = sphi 0, %s155
    %s156 = sphi 0, %s153
    %s157 = sphi 0, %s156
    %s173 = sphi 0, %s157
  $region4: #{encoder_layer.4} parent=0 // loop_header_branch
    %13 = sbr.rel (%p11) target = $region8
  $region5: #{encoder_layer.4} parent=0 // loop_body
    %s15 = ssub.s32 %s10, 1
    %s16 = ssub.s32 %s10, 2
    %s26 = sadd.s32 1, %s19
    %p27 = scmp.ge.s32.totalorder %s26, 1
    %s28 = scalar_select %p27, 0, %s26
    %s29 = sadd.s32 1, %s18
    %s30 = scalar_select %p27, %s29, %s18
    %p31 = scmp.ge.s32.totalorder %s30, 1
    %s32 = scalar_select %p31, 0, %s30
    %s33 = sadd.s32 1, %s17
    %s34 = scalar_select %p31, %s33, %s17
    %p35 = scmp.ge.s32.totalorder %s34, 2
    %s36 = scalar_select %p35, 0, %s34
    %s37 = ssub.s32 %s17, %s36
    %s38 = ssub.s32 %s18, %s32
    %s39 = sor.u32 %s37, %s38
    %p40 = scmp.eq.s32.totalorder %s39, 0
    %s42 = sadd.s32 %s41, 1
    %s43 = scalar_select %p40, %s41, %s42
    %p46 = pneg %p40
    %p47 = scmp.eq.s32.totalorder %s10, 1
    %p48 = por %p46, %p47
    %p49 = scmp.ne.s32.totalorder %s41, %s44
    %p50 = scmp.eq.s32.totalorder %s10, 0
    %p51 = por %p49, %p50
    %p52 = scmp.ne.s32.totalorder %s41, %s44
    %p53 = scmp.eq.s32.totalorder %s15, 1
    %p54 = por %p52, %p53
    %p55 = scmp.ne.s32.totalorder %s44, %s45
    %p56 = scmp.eq.s32.totalorder %s15, 0
    %p57 = por %p55, %p56
    %p58 = scmp.ne.s32.totalorder %s44, %s45
    %p59 = scmp.eq.s32.totalorder %s16, 1
    %p60 = por %p58, %p59
    %p62 = scmp.ne.s32.totalorder %s45, %s61
    %p63 = scmp.eq.s32.totalorder %s16, 0
    %p64 = por %p62, %p63
    %s65 = ssub.s32 %s17, %s36
    %s66 = ssub.s32 %s18, %s32
    %s67 = sor.u32 %s65, %s66
    %p68 = scmp.eq.s32.totalorder %s67, 0
    %s70 = sadd.s32 %s69, 1
    %s71 = scalar_select %p68, %s69, %s70
    %p74 = pneg %p68
    %p75 = scmp.eq.s32.totalorder %s10, 1
    %p76 = por %p74, %p75
    %p77 = scmp.ne.s32.totalorder %s69, %s72
    %p78 = scmp.eq.s32.totalorder %s10, 0
    %p79 = por %p77, %p78
    %p80 = scmp.ne.s32.totalorder %s69, %s72
    %p81 = scmp.eq.s32.totalorder %s15, 1
    %p82 = por %p80, %p81
    %p83 = scmp.ne.s32.totalorder %s72, %s73
    %p84 = scmp.eq.s32.totalorder %s15, 0
    %p85 = por %p83, %p84
    %p86 = scmp.ne.s32.totalorder %s72, %s73
    %p87 = scmp.eq.s32.totalorder %s16, 1
    %p88 = por %p86, %p87
    %p90 = scmp.ne.s32.totalorder %s73, %s89
    %p91 = scmp.eq.s32.totalorder %s16, 0
    %p92 = por %p90, %p91
    %s93 = ssub.s32 %s17, %s36
    %s94 = ssub.s32 %s19, %s28
    %s95 = sor.u32 %s93, %s94
    %p96 = scmp.eq.s32.totalorder %s95, 0
    %s98 = sadd.s32 %s97, 1
    %s99 = scalar_select %p96, %s97, %s98
    %p102 = pneg %p96
    %p103 = scmp.eq.s32.totalorder %s10, 1
    %p104 = por %p102, %p103
    %p105 = scmp.ne.s32.totalorder %s97, %s100
    %p106 = scmp.eq.s32.totalorder %s10, 0
    %p107 = por %p105, %p106
    %p108 = scmp.ne.s32.totalorder %s97, %s100
    %p109 = scmp.eq.s32.totalorder %s15, 1
    %p110 = por %p108, %p109
    %p111 = scmp.ne.s32.totalorder %s100, %s101
    %p112 = scmp.eq.s32.totalorder %s15, 0
    %p113 = por %p111, %p112
    %p114 = scmp.ne.s32.totalorder %s100, %s101
    %p115 = scmp.eq.s32.totalorder %s16, 1
    %p116 = por %p114, %p115
    %p118 = scmp.ne.s32.totalorder %s101, %s117
    %p119 = scmp.eq.s32.totalorder %s16, 0
    %p120 = por %p118, %p119
    %s121 = ssub.s32 %s17, %s36
    %s122 = ssub.s32 %s19, %s28
    %s123 = sor.u32 %s121, %s122
    %p124 = scmp.eq.s32.totalorder %s123, 0
    %s126 = sadd.s32 %s125, 1
    %s127 = scalar_select %p124, %s125, %s126
    %p130 = pneg %p124
    %p131 = scmp.eq.s32.totalorder %s10, 1
    %p132 = por %p130, %p131
    %p133 = scmp.ne.s32.totalorder %s125, %s128
    %p134 = scmp.eq.s32.totalorder %s10, 0
    %p135 = por %p133, %p134
    %p136 = scmp.ne.s32.totalorder %s125, %s128
    %p137 = scmp.eq.s32.totalorder %s15, 1
    %p138 = por %p136, %p137
    %p139 = scmp.ne.s32.totalorder %s128, %s129
    %p140 = scmp.eq.s32.totalorder %s15, 0
    %p141 = por %p139, %p140
    %p142 = scmp.ne.s32.totalorder %s128, %s129
    %p143 = scmp.eq.s32.totalorder %s16, 1
    %p144 = por %p142, %p143
    %p146 = scmp.ne.s32.totalorder %s129, %s145
    %p147 = scmp.eq.s32.totalorder %s16, 0
    %p148 = por %p146, %p147
    %s149 = ssub.s32 %s17, %s36
    %s150 = ssub.s32 %s18, %s32
    %s151 = sor.u32 %s149, %s150
    %p152 = scmp.eq.s32.totalorder %s151, 0
    %s154 = sadd.s32 %s153, 1
    %s155 = scalar_select %p152, %s153, %s154
    %p158 = pneg %p152
    %p159 = scmp.eq.s32.totalorder %s10, 1
    %p160 = por %p158, %p159
    %p161 = scmp.ne.s32.totalorder %s153, %s156
    %p162 = scmp.eq.s32.totalorder %s10, 0
    %p163 = por %p161, %p162
    %p164 = scmp.ne.s32.totalorder %s153, %s156
    %p165 = scmp.eq.s32.totalorder %s15, 1
    %p166 = por %p164, %p165
    %p167 = scmp.ne.s32.totalorder %s156, %s157
    %p168 = scmp.eq.s32.totalorder %s15, 0
    %p169 = por %p167, %p168
    %p170 = scmp.ne.s32.totalorder %s156, %s157
    %p171 = scmp.eq.s32.totalorder %s16, 1
    %p172 = por %p170, %p171
    %p174 = scmp.ne.s32.totalorder %s157, %s173
    %p175 = scmp.eq.s32.totalorder %s16, 0
    %p176 = por %p174, %p175
    %p177 = scmp.le.s32.totalorder 1, %s10
    %p178 = scmp.lt.s32.totalorder %s10, 3
    %p179 = pnand %p177, %p178
    %p180 = pneg %p179
    // Predicated region
    $region9: #{encoder_layer.4} parent=5 // pred_check
      _
    $region10: #{encoder_layer.4} parent=5 // pred_check_branch
      %182 = sbr.rel (%p179) target = $region12
    $region11: #{encoder_layer.4} parent=5 // pred_region
      %s183 = ssub.s32 %s10, 1
    $region12: #{encoder_layer.4} parent=5 // pred_fallthru
      _
    %p184 = scmp.lt.s32.totalorder %s10, 2
    // Predicated region
    $region13: #{encoder_layer.4} parent=5 // pred_check
      %p185 = pneg %p184
    $region14: #{encoder_layer.4} parent=5 // pred_check_branch
      %187 = sbr.rel (%p185) target = $region16
    $region15: #{encoder_layer.4} parent=5 // pred_region
      // Predicated region
      $region17: #{encoder_layer.4} parent=15 // pred_check
        %p188 = pneg %p51
      $region18: #{encoder_layer.4} parent=15 // pred_check_branch
        %190 = sbr.rel (%p188) target = $region20
      $region19: #{encoder_layer.4} parent=15 // pred_region
        %p191 = scmp.lt.s32.totalorder %s17, 1
        %s192 = scalar_select %p191, %s17, 1
        %p193 = scmp.lt.s32.totalorder %s18, 0
        %s194 = scalar_select %p193, %s18, 0
        %s195 = sadd.s32 %s194, %s192
        %s196 = smul.addr %s195, 8
        %s197 = scalar_lea.vmem %s0, %s196
      $region20: #{encoder_layer.4} parent=15 // pred_fallthru
        _
      // Predicated region
      $region21: #{encoder_layer.4} parent=15 // pred_check
        %p198 = pneg %p79
      $region22: #{encoder_layer.4} parent=15 // pred_check_branch
        %200 = sbr.rel (%p198) target = $region24
      $region23: #{encoder_layer.4} parent=15 // pred_region
        %p201 = scmp.lt.s32.totalorder %s17, 1
        %s202 = scalar_select %p201, %s17, 1
        %p203 = scmp.lt.s32.totalorder %s18, 0
        %s204 = scalar_select %p203, %s18, 0
        %s205 = sadd.s32 %s204, %s202
        %s206 = smul.addr %s205, 4
        %s207 = scalar_lea.vmem %s1, %s206
      $region24: #{encoder_layer.4} parent=15 // pred_fallthru
        _
      // Predicated region
      $region25: #{encoder_layer.4} parent=15 // pred_check
        %p208 = pneg %p107
      $region26: #{encoder_layer.4} parent=15 // pred_check_branch
        %210 = sbr.rel (%p208) target = $region28
      $region27: #{encoder_layer.4} parent=15 // pred_region
        %p211 = scmp.lt.s32.totalorder %s17, 1
        %s212 = scalar_select %p211, %s17, 1
        %p213 = scmp.lt.s32.totalorder %s19, 0
        %s214 = scalar_select %p213, %s19, 0
        %s215 = sadd.s32 %s214, %s212
        %s216 = smul.addr %s215, 4
        %s217 = scalar_lea.vmem %s2, %s216
      $region28: #{encoder_layer.4} parent=15 // pred_fallthru
        _
      // Predicated region
      $region29: #{encoder_layer.4} parent=15 // pred_check
        %p218 = pneg %p135
      $region30: #{encoder_layer.4} parent=15 // pred_check_branch
        %220 = sbr.rel (%p218) target = $region32
      $region31: #{encoder_layer.4} parent=15 // pred_region
        %p221 = scmp.lt.s32.totalorder %s17, 1
        %s222 = scalar_select %p221, %s17, 1
        %p223 = scmp.lt.s32.totalorder %s19, 0
        %s224 = scalar_select %p223, %s19, 0
        %s225 = sadd.s32 %s224, %s222
        %s226 = smul.addr %s225, 4
        %s227 = scalar_lea.vmem %s3, %s226
      $region32: #{encoder_layer.4} parent=15 // pred_fallthru
        _
    $region16: #{encoder_layer.4} parent=5 // pred_fallthru
      _
    %p228 = scmp.le.s32.totalorder 1, %s10
    %p229 = scmp.lt.s32.totalorder %s10, 3
    %p230 = pnand %p228, %p229
    %p231 = pneg %p230
    // Predicated region
    $region33: #{encoder_layer.4} parent=5 // pred_check
      _
    $region34: #{encoder_layer.4} parent=5 // pred_check_branch
      %233 = sbr.rel (%p230) target = $region36
    $region35: #{encoder_layer.4} parent=5 // pred_region
      %s234 = ssub.s32 %s10, 1
      %p235 = scmp.lt.s32.totalorder %s20, 1
      %s236 = scalar_select %p235, %s20, 1
      %p237 = scmp.lt.s32.totalorder %s21, 0
      %s238 = scalar_select %p237, %s21, 0
      %s239 = sadd.s32 %s238, %s236
      %s240 = smul.addr %s239, 8
      %s241 = scalar_lea.vmem %s0, %s240
      %p242 = pneg %p57
      %p243 = pneg %p54
      %p244 = scmp.lt.s32.totalorder %s20, 1
      %s245 = scalar_select %p244, %s20, 1
      %p246 = scmp.lt.s32.totalorder %s21, 0
      %s247 = scalar_select %p246, %s21, 0
      %s248 = sadd.s32 %s247, %s245
      %s249 = smul.addr %s248, 4
      %s250 = scalar_lea.vmem %s1, %s249
      %p251 = pneg %p85
      %p252 = pneg %p82
      %p253 = scmp.lt.s32.totalorder %s20, 1
      %s254 = scalar_select %p253, %s20, 1
      %p255 = scmp.lt.s32.totalorder %s22, 0
      %s256 = scalar_select %p255, %s22, 0
      %s257 = sadd.s32 %s256, %s254
      %s258 = smul.addr %s257, 4
      %s259 = scalar_lea.vmem %s2, %s258
      %p260 = pneg %p113
      %p261 = pneg %p110
      %p262 = scmp.lt.s32.totalorder %s20, 1
      %s263 = scalar_select %p262, %s20, 1
      %p264 = scmp.lt.s32.totalorder %s22, 0
      %s265 = scalar_select %p264, %s22, 0
      %s266 = sadd.s32 %s265, %s263
      %s267 = smul.addr %s266, 4
      %s268 = scalar_lea.vmem %s3, %s267
      %p269 = pneg %p141
      %p270 = pneg %p138
      %p271 = pneg %p169
      %p272 = pneg %p166
      %p273 = scmp.lt.s32.totalorder %s20, 1
      %s274 = scalar_select %p273, %s20, 1
      %p275 = scmp.lt.s32.totalorder %s21, 0
      %s276 = scalar_select %p275, %s21, 0
      %s277 = sadd.s32 %s276, %s274
      %s278 = smul.addr %s277, 8
      %s279 = scalar_lea.vmem %s4, %s278
      %p280 = scmp.lt.s32.totalorder %s20, 1
      %s281 = scalar_select %p280, %s20, 1
      %p282 = scmp.lt.s32.totalorder %s21, 0
      %s283 = scalar_select %p282, %s21, 0
      %s284 = sadd.s32 %s283, %s281
      %s285 = smul.addr %s284, 8
      %s286 = scalar_lea.vmem %s0, %s285
      %p287 = scmp.lt.s32.totalorder %s20, 1
      %s288 = scalar_select %p287, %s20, 1
      %p289 = scmp.lt.s32.totalorder %s21, 0
      %s290 = scalar_select %p289, %s21, 0
      %s291 = sadd.s32 %s290, %s288
      %s292 = smul.addr %s291, 4
      %s293 = scalar_lea.vmem %s1, %s292
      %p294 = scmp.lt.s32.totalorder %s20, 1
      %s295 = scalar_select %p294, %s20, 1
      %p296 = scmp.lt.s32.totalorder %s22, 0
      %s297 = scalar_select %p296, %s22, 0
      %s298 = sadd.s32 %s297, %s295
      %s299 = smul.addr %s298, 4
      %s300 = scalar_lea.vmem %s2, %s299
      %p301 = scmp.lt.s32.totalorder %s20, 1
      %s302 = scalar_select %p301, %s20, 1
      %p303 = scmp.lt.s32.totalorder %s22, 0
      %s304 = scalar_select %p303, %s22, 0
      %s305 = sadd.s32 %s304, %s302
      %s306 = smul.addr %s305, 4
      %s307 = scalar_lea.vmem %s3, %s306
      %p308 = scmp.lt.s32.totalorder %s20, 1
      %s309 = scalar_select %p308, %s20, 1
      %p310 = scmp.lt.s32.totalorder %s21, 0
      %s311 = scalar_select %p310, %s21, 0
      %s312 = sadd.s32 %s311, %s309
      %s313 = smul.addr %s312, 8
      %s314 = scalar_lea.vmem %s4, %s313
      %p316 = scmp.eq.s32.totalorder %s22, 0
      // Predicated region
      $region37: #{encoder_layer.4} parent=35 // pred_check
        %p317 = pneg %p316
      $region38: #{encoder_layer.4} parent=35 // pred_check_branch
        %319 = sbr.rel (%p317) target = $region40
      $region39: #{encoder_layer.4} parent=35 // pred_region
        %vm320 = vcmask 7168
        %321 = vst.msk [vmem:[#allocation2] sm:$0xff] %vm320, -inf
        %322 = vst.msk [vmem:[#allocation3] sm:$0xff] %vm320, 0.0
        %vm323 = vcmask 261120
        %324 = vst.msk [vmem:[#allocation4] sm:$0xff] %vm323, 0.0
      $region40: #{encoder_layer.4} parent=35 // pred_fallthru
        _
      %v325 = vld [vmem:[%s293] sm:$0xf]
      %v326 = vld [vmem:[%s300] sm:$0xf]
      %v327 = vld [vmem:[%s307] sm:$0xf]
      %vm328 = vcmask 261120
      %v330 = vsel %vm328, %v325, 0
      %v333 = vsel %vm328, %v326, 0
      %335 = vmatprep.subr.bf16.mxu0 0
      %336 = vmatpush1.bf16.xpose.msra.mxu0 %v333
      %337 = vmatprep.subr.bf16.mxu0 0
      %338 = vmatpush1.bf16.xpose.msra.mxu0 0
      %339 = vmatprep.subr.bf16.mxu0 0
      %340 = vmatpush1.bf16.xpose.msra.mxu0 0
      %341 = vmatprep.subr.bf16.mxu0 0
      %342 = vmatpush1.bf16.xpose.msra.mxu0 0
      %343 = vmatprep.subr.bf16.mxu0 0
      %344 = vmatpush1.bf16.xpose.msra.mxu0 0
      %345 = vmatprep.subr.bf16.mxu0 0
      %346 = vmatpush1.bf16.xpose.msra.mxu0 0
      %347 = vmatprep.subr.bf16.mxu0 0
      %348 = vmatpush1.bf16.xpose.msra.mxu0 0
      %349 = vmatprep.subr.bf16.mxu0 0
      %350 = vmatpush1.bf16.xpose.msra.mxu0 0
      %351 = vmatprep.subr.bf16.mxu0 0
      %352 = vmatpush1.bf16.xpose.msra.mxu0 0
      %353 = vmatprep.subr.bf16.mxu0 0
      %354 = vmatpush1.bf16.xpose.msra.mxu0 0
      %355 = vmatprep.subr.bf16.mxu0 0
      %356 = vmatpush1.bf16.xpose.msra.mxu0 0
      %357 = vmatprep.subr.bf16.mxu0 0
      %358 = vmatpush1.bf16.xpose.msra.mxu0 0
      %359 = vmatprep.subr.bf16.mxu0 0
      %360 = vmatpush1.bf16.xpose.msra.mxu0 0
      %361 = vmatprep.subr.bf16.mxu0 0
      %362 = vmatpush1.bf16.xpose.msra.mxu0 0
      %363 = vmatprep.subr.bf16.mxu0 0
      %364 = vmatpush1.bf16.xpose.msra.mxu0 0
      %365 = vmatprep.subr.bf16.mxu0 0
      %366 = vmatpush1.bf16.xpose.msra.mxu0 0
      %367 = vmatprep.mubr.bf16.mxu0 0
      %368 = vmatmul.mubr.bf16.gmra.mrb[0].mxu0 %v330
      %v369 = vpop.f32.mrb[0].mxu0
      %v370 = vadd.f32 0.0, %v369
      %v371 = vpop.f32.mrb[0].mxu0
      %v372 = vpop.f32.mrb[0].mxu0
      %v373 = vpop.f32.mrb[0].mxu0
      %374 = vdwg.mxu0
      %v375 = vld [vmem:[#allocation2] sm:$0xff]
      %vm376 = vcmask 64512
      %v377 = vsel %vm376, %v370, -inf
      %378 = vmax.xlane.f32.xlu0 %v377
      %v379 = vpop.xlane.xlu0 %378
      %v380 = vmax.f32 %v375, %v379
      %v381 = vsub.f32 %v375, %v380
      %v382 = vmul.f32 %v381, 1.442695
      %v383 = vpow.pop %v382
      %385 = vset.pattern.permute.xlu0 0
      %386 = vperm.xlu0 %385, %v380
      %v387 = vpop.permute.xlu0 %386
      %v389 = vsub.f32 %v370, %v387
      %v390 = vmul.f32 %v389, 1.442695
      %v391 = vpow.pop %v390
      %v392 = vld [vmem:[#allocation3] sm:$0xff]
      %v393 = vmul.f32 %v383, %v392
      %v394 = vsel %vm376, %v391, 0.0
      %395 = vadd.xlane.f32.xlu0 %v394
      %v396 = vpop.xlane.xlu0 %395
      %v397 = vadd.f32 %v393, %v396
      %vm398 = vcmask 7168
      %399 = vst.msk [vmem:[#allocation3] sm:$0xff] %vm398, %v397
      %v400 = vld [vmem:[#allocation4] sm:$0xff]
      %402 = vset.pattern.permute.xlu0 0
      %403 = vperm.xlu0 %402, %v383
      %v404 = vpop.permute.xlu0 %403
      %v406 = vmul.f32 %v404, %v400
      %v407 = vpack.c.bf16 %v391, %v391
      %v409 = vsel %vm376, %v407, 0
      %vm411 = vcmask 1043456
      %v413 = vsel %vm411, %v327, 0
      %415 = vmatprep.subr.bf16.mxu0 0
      %416 = vmatpush1.bf16.msra.mxu0 %v413
      %417 = vmatprep.subr.bf16.mxu0 0
      %418 = vmatpush1.bf16.msra.mxu0 0
      %419 = vmatprep.subr.bf16.mxu0 0
      %420 = vmatpush1.bf16.msra.mxu0 0
      %421 = vmatprep.subr.bf16.mxu0 0
      %422 = vmatpush1.bf16.msra.mxu0 0
      %423 = vmatprep.subr.bf16.mxu0 0
      %424 = vmatpush1.bf16.msra.mxu0 0
      %425 = vmatprep.subr.bf16.mxu0 0
      %426 = vmatpush1.bf16.msra.mxu0 0
      %427 = vmatprep.subr.bf16.mxu0 0
      %428 = vmatpush1.bf16.msra.mxu0 0
      %429 = vmatprep.subr.bf16.mxu0 0
      %430 = vmatpush1.bf16.msra.mxu0 0
      %431 = vmatprep.subr.bf16.mxu0 0
      %432 = vmatpush1.bf16.msra.mxu0 0
      %433 = vmatprep.subr.bf16.mxu0 0
      %434 = vmatpush1.bf16.msra.mxu0 0
      %435 = vmatprep.subr.bf16.mxu0 0
      %436 = vmatpush1.bf16.msra.mxu0 0
      %437 = vmatprep.subr.bf16.mxu0 0
      %438 = vmatpush1.bf16.msra.mxu0 0
      %439 = vmatprep.subr.bf16.mxu0 0
      %440 = vmatpush1.bf16.msra.mxu0 0
      %441 = vmatprep.subr.bf16.mxu0 0
      %442 = vmatpush1.bf16.msra.mxu0 0
      %443 = vmatprep.subr.bf16.mxu0 0
      %444 = vmatpush1.bf16.msra.mxu0 0
      %445 = vmatprep.subr.bf16.mxu0 0
      %446 = vmatpush1.bf16.msra.mxu0 0
      %447 = vmatprep.mubr.bf16.mxu0 0
      %448 = vmatmul.mubr.bf16.gmra.mrb[0].mxu0 %v409
      %v449 = vpop.f32.mrb[0].mxu0
      %v450 = vadd.f32 0.0, %v449
      %v451 = vpop.f32.mrb[0].mxu0
      %v452 = vpop.f32.mrb[0].mxu0
      %v453 = vpop.f32.mrb[0].mxu0
      %454 = vdwg.mxu0
      %v455 = vadd.f32 %v406, %v450
      %456 = vst.msk [vmem:[#allocation4] sm:$0xff] %vm328, %v455
      %457 = vst.msk [vmem:[#allocation2] sm:$0xff] %vm398, %v380
      // Predicated region
      $region41: #{encoder_layer.4} parent=35 // pred_check
        %p458 = pneg %p316
      $region42: #{encoder_layer.4} parent=35 // pred_check_branch
        %460 = sbr.rel (%p458) target = $region44
      $region43: #{encoder_layer.4} parent=35 // pred_region
        %v461 = vld [vmem:[#allocation3] sm:$0xff]
        %v462 = vrcp.pop %v461
        %v463 = vld [vmem:[%s286] sm:$0xff]
        %v464 = vld [vmem:[#allocation4] sm:$0xff]
        %466 = vset.pattern.permute.xlu0 0
        %467 = vperm.xlu0 %466, %v462
        %v468 = vpop.permute.xlu0 %467
        %v470 = vmul.f32 %v464, %v468
        %v471 = vadd.f32 %v463, %v470
        %472 = vst.msk [vmem:[%s314] sm:$0xff] %vm328, %v471
      $region44: #{encoder_layer.4} parent=35 // pred_fallthru
        _
      %p473 = scmp.lt.s32.totalorder %s20, 1
      %s474 = scalar_select %p473, %s20, 1
      %p475 = scmp.lt.s32.totalorder %s21, 0
      %s476 = scalar_select %p475, %s21, 0
      %s477 = sadd.s32 %s476, %s474
      %s478 = smul.addr %s477, 8
      %s479 = scalar_lea.vmem %s4, %s478
      // Predicated region
      $region45: #{encoder_layer.4} parent=35 // pred_check
        %p480 = pneg %p166
      $region46: #{encoder_layer.4} parent=35 // pred_check_branch
        %482 = sbr.rel (%p480) target = $region48
      $region47: #{encoder_layer.4} parent=35 // pred_region
        _
      $region48: #{encoder_layer.4} parent=35 // pred_fallthru
        _
    $region36: #{encoder_layer.4} parent=5 // pred_fallthru
      _
    %p483 = scmp.le.s32.totalorder 2, %s10
    // Predicated region
    $region49: #{encoder_layer.4} parent=5 // pred_check
      %p484 = pneg %p483
    $region50: #{encoder_layer.4} parent=5 // pred_check_branch
      %486 = sbr.rel (%p484) target = $region52
    $region51: #{encoder_layer.4} parent=5 // pred_region
      %s487 = ssub.s32 %s10, 2
      // Predicated region
      $region53: #{encoder_layer.4} parent=51 // pred_check
        %p488 = pneg %p172
      $region54: #{encoder_layer.4} parent=51 // pred_check_branch
        %490 = sbr.rel (%p488) target = $region56
      $region55: #{encoder_layer.4} parent=51 // pred_region
        %p491 = scmp.lt.s32.totalorder %s23, 1
        %s492 = scalar_select %p491, %s23, 1
        %p493 = scmp.lt.s32.totalorder %s24, 0
        %s494 = scalar_select %p493, %s24, 0
        %s495 = sadd.s32 %s494, %s492
        %s496 = smul.addr %s495, 8
        %s497 = scalar_lea.vmem %s4, %s496
      $region56: #{encoder_layer.4} parent=51 // pred_fallthru
        _
    $region52: #{encoder_layer.4} parent=5 // pred_fallthru
      _
  $region6: #{encoder_layer.4} parent=0 // loop_footer
    %s14 = sadd.s32 1, %s10
  $region7: #{encoder_layer.4} parent=0 // loop_footer_branch
    %9 = sbr.rel target = $region3
  $region8: #{encoder_layer.4} parent=0 // loop_exit
    _

// kernel: encoder_layer.3
$region0: #{encoder_layer.3}
  #allocation0 [shape = 'u32[]', space=smem, size = 0x4, offset = 0x4, fixed_abs, tag = 'smem constant byte address 0x4 - core index']
  #allocation1 [shape = 'u32[144,128]{1,0:T(1,128)}', space=vmem, size = 0x12000, scoped, tag = 'internal scratch']
  %s0 = inlined_call_operand.vmem [shape: f32[16,32], index: 0, kind: input, shape index: {}]
  %s1 = inlined_call_operand.vmem [shape: f32[1,32], index: 1, kind: input, shape index: {}]
  %s2 = inlined_call_operand.vmem [shape: f32[1,32], index: 2, kind: input, shape index: {}]
  %s3 = inlined_call_operand.vmem [shape: bf16[32,32], index: 3, kind: input, shape index: {}]
  %s4 = inlined_call_operand.vmem [shape: f32[1,32], index: 4, kind: input, shape index: {}]
  %s5 = inlined_call_operand.vmem [shape: bf16[32,32], index: 5, kind: input, shape index: {}]
  %s6 = inlined_call_operand.vmem [shape: f32[1,32], index: 6, kind: input, shape index: {}]
  %s7 = inlined_call_operand.vmem [shape: bf16[32,32], index: 7, kind: input, shape index: {}]
  %s8 = inlined_call_operand.vmem [shape: f32[1,32], index: 8, kind: input, shape index: {}]
  %s9 = inlined_call_operand.vmem [shape: bf16[16,32], index: 9, kind: output, shape index: {0}]
  %s10 = inlined_call_operand.vmem [shape: bf16[16,32], index: 10, kind: output, shape index: {1}]
  %s11 = inlined_call_operand.vmem [shape: bf16[16,32], index: 11, kind: output, shape index: {2}]
  %12 = xla_tuple %s9, %s10, %s11
  %s13 = sld [smem:[#allocation0]]
  $region62: #{encoder_layer.3} parent=0
    _
  %s15 = ssub.s32 1, %s13
  %s16 = scalar_select 0, %s15, %s13
  // Predicated region
  $region2: #{encoder_layer.3} parent=0 // pred_check
    _
  $region3: #{encoder_layer.3} parent=0 // pred_check_branch
    %18 = sbr.rel (0) target = $region5
  $region4: #{encoder_layer.3} parent=0 // pred_region
    _
  $region5: #{encoder_layer.3} parent=0 // pred_fallthru
    _
  // Predicated region
  $region6: #{encoder_layer.3} parent=0 // pred_check
    _
  $region7: #{encoder_layer.3} parent=0 // pred_check_branch
    %20 = sbr.rel (0) target = $region9
  $region8: #{encoder_layer.3} parent=0 // pred_region
    _
  $region9: #{encoder_layer.3} parent=0 // pred_fallthru
    _
  // Predicated region
  $region10: #{encoder_layer.3} parent=0 // pred_check
    _
  $region11: #{encoder_layer.3} parent=0 // pred_check_branch
    %22 = sbr.rel (0) target = $region13
  $region12: #{encoder_layer.3} parent=0 // pred_region
    _
  $region13: #{encoder_layer.3} parent=0 // pred_fallthru
    _
  // Predicated region
  $region14: #{encoder_layer.3} parent=0 // pred_check
    _
  $region15: #{encoder_layer.3} parent=0 // pred_check_branch
    %24 = sbr.rel (0) target = $region17
  $region16: #{encoder_layer.3} parent=0 // pred_region
    _
  $region17: #{encoder_layer.3} parent=0 // pred_fallthru
    _
  // Predicated region
  $region18: #{encoder_layer.3} parent=0 // pred_check
    _
  $region19: #{encoder_layer.3} parent=0 // pred_check_branch
    %26 = sbr.rel (0) target = $region21
  $region20: #{encoder_layer.3} parent=0 // pred_region
    _
  $region21: #{encoder_layer.3} parent=0 // pred_fallthru
    _
  // Predicated region
  $region22: #{encoder_layer.3} parent=0 // pred_check
    _
  $region23: #{encoder_layer.3} parent=0 // pred_check_branch
    %28 = sbr.rel (0) target = $region25
  $region24: #{encoder_layer.3} parent=0 // pred_region
    _
  $region25: #{encoder_layer.3} parent=0 // pred_fallthru
    _
  // Predicated region
  $region26: #{encoder_layer.3} parent=0 // pred_check
    _
  $region27: #{encoder_layer.3} parent=0 // pred_check_branch
    %30 = sbr.rel (0) target = $region29
  $region28: #{encoder_layer.3} parent=0 // pred_region
    _
  $region29: #{encoder_layer.3} parent=0 // pred_fallthru
    _
  // Predicated region
  $region30: #{encoder_layer.3} parent=0 // pred_check
    _
  $region31: #{encoder_layer.3} parent=0 // pred_check_branch
    %32 = sbr.rel (0) target = $region33
  $region32: #{encoder_layer.3} parent=0 // pred_region
    _
  $region33: #{encoder_layer.3} parent=0 // pred_fallthru
    _
  // Predicated region
  $region34: #{encoder_layer.3} parent=0 // pred_check
    _
  $region35: #{encoder_layer.3} parent=0 // pred_check_branch
    %34 = sbr.rel (0) target = $region37
  $region36: #{encoder_layer.3} parent=0 // pred_region
    _
  $region37: #{encoder_layer.3} parent=0 // pred_fallthru
    _
  %v36 = vld [vmem:[%s0] sm:$0xff]
  %v37 = vld [vmem:[%s0 + $0x8] sm:$0xff]
  %v38 = vld [vmem:[%s1] sm:$0x1]
  %v39 = vld [vmem:[%s2] sm:$0x1]
  %vm40 = vcmask 261120
  %v41 = vsel %vm40, %v36, 0.0
  %42 = vadd.xlane.f32.xlu0 %v41
  %v43 = vpop.xlane.xlu0 %42
  %v44 = vsel %vm40, %v37, 0.0
  %45 = vadd.xlane.f32.xlu0 %v44
  %v46 = vpop.xlane.xlu0 %45
  %v47 = vmul.f32 %v36, %v36
  %v48 = vmul.f32 %v37, %v37
  %v49 = vsel %vm40, %v47, 0.0
  %50 = vadd.xlane.f32.xlu0 %v49
  %v51 = vpop.xlane.xlu0 %50
  %v52 = vsel %vm40, %v48, 0.0
  %53 = vadd.xlane.f32.xlu0 %v52
  %v54 = vpop.xlane.xlu0 %53
  %v55 = vmul.f32 %v43, 0.03125
  %v56 = vmul.f32 %v46, 0.03125
  %v57 = vmul.f32 %v51, 0.03125
  %v58 = vmul.f32 %v54, 0.03125
  %v59 = vmul.f32 %v55, %v55
  %v60 = vmul.f32 %v56, %v56
  %v61 = vsub.f32 %v57, %v59
  %v62 = vsub.f32 %v58, %v60
  %v63 = vsub.f32 %v36, %v55
  %v64 = vsub.f32 %v37, %v56
  %v65 = vadd.f32 %v61, 1e-05
  %v66 = vadd.f32 %v62, 1e-05
  %v67 = vrsqrt.pop %v65
  %v68 = vrsqrt.pop %v66
  %v69 = vmul.f32 %v63, %v67
  %v70 = vmul.f32 %v64, %v68
  %v72 = vlaneseq
  %v73 = vshrl.u32 %v72, 7
  %v74 = vsub.s32 0, %v73
  %v75 = vrot.slane %v38, %v74
  %v77 = vmul.f32 %v69, %v75
  %v78 = vmul.f32 %v70, %v75
  %v80 = vlaneseq
  %v81 = vshrl.u32 %v80, 7
  %v82 = vsub.s32 0, %v81
  %v83 = vrot.slane %v39, %v82
  %v85 = vadd.f32 %v77, %v83
  %v86 = vadd.f32 %v78, %v83
  %v87 = vpack.c.bf16 %v86, %v85
  %v88 = vld [vmem:[%s3] sm:$0xf]
  %v89 = vld [vmem:[%s3 + $0x4] sm:$0xf]
  %v90 = vld [vmem:[%s3 + $0x8] sm:$0xf]
  %v91 = vld [vmem:[%s3 + $0xc] sm:$0xf]
  %v92 = vld [vmem:[%s4] sm:$0x1]
  %v94 = vlaneseq
  %v95 = vshrl.u32 %v94, 7
  %v96 = vsub.s32 0, %v95
  %v97 = vrot.slane %v92, %v96
  %v103 = vunpack.c.l.b16 %v88
  %v104 = vunpack.c.l.b16 %v89
  %v105 = vunpack.c.l.b16 %v90
  %v106 = vunpack.c.l.b16 %v91
  %v107 = vpack.c.b16 %v104, %v103
  %v108 = vpack.c.b16 %v106, %v105
  %v112 = vsel %vm40, %v87, 0
  %114 = vmatprep.subr.bf16.mxu0 0
  %115 = vmatpush1.bf16.msra.mxu0 %v107
  %116 = vmatprep.subr.bf16.mxu0 0
  %117 = vmatpush1.bf16.msra.mxu0 %v108
  %118 = vmatprep.subr.bf16.mxu0 0
  %119 = vmatpush1.bf16.msra.mxu0 0
  %120 = vmatprep.subr.bf16.mxu0 0
  %121 = vmatpush1.bf16.msra.mxu0 0
  %122 = vmatprep.subr.bf16.mxu0 0
  %123 = vmatpush1.bf16.msra.mxu0 0
  %124 = vmatprep.subr.bf16.mxu0 0
  %125 = vmatpush1.bf16.msra.mxu0 0
  %126 = vmatprep.subr.bf16.mxu0 0
  %127 = vmatpush1.bf16.msra.mxu0 0
  %128 = vmatprep.subr.bf16.mxu0 0
  %129 = vmatpush1.bf16.msra.mxu0 0
  %130 = vmatprep.subr.bf16.mxu0 0
  %131 = vmatpush1.bf16.msra.mxu0 0
  %132 = vmatprep.subr.bf16.mxu0 0
  %133 = vmatpush1.bf16.msra.mxu0 0
  %134 = vmatprep.subr.bf16.mxu0 0
  %135 = vmatpush1.bf16.msra.mxu0 0
  %136 = vmatprep.subr.bf16.mxu0 0
  %137 = vmatpush1.bf16.msra.mxu0 0
  %138 = vmatprep.subr.bf16.mxu0 0
  %139 = vmatpush1.bf16.msra.mxu0 0
  %140 = vmatprep.subr.bf16.mxu0 0
  %141 = vmatpush1.bf16.msra.mxu0 0
  %142 = vmatprep.subr.bf16.mxu0 0
  %143 = vmatpush1.bf16.msra.mxu0 0
  %144 = vmatprep.subr.bf16.mxu0 0
  %145 = vmatpush1.bf16.msra.mxu0 0
  %146 = vmatprep.mubr.bf16.mxu0 0
  %147 = vmatmul.mubr.bf16.gmra.mrb[0].mxu0 %v112
  %v148 = vpop.f32.mrb[0].mxu0
  %v149 = vadd.f32 %v97, %v148
  %v150 = vpop.f32.mrb[0].mxu0
  %v151 = vpop.f32.mrb[0].mxu0
  %v152 = vadd.f32 %v97, %v151
  %v153 = vpop.f32.mrb[0].mxu0
  %154 = vdwg.mxu0
  %v155 = vmul.f32 %v149, 0.17677669
  %v156 = vmul.f32 %v152, 0.17677669
  %v157 = vpack.c.bf16 %v156, %v155
  %v159 = vunpack.c.l.b16 %v157
  %v160 = vunpack.c.h.b16 %v157
  %v161 = vpack.c.b16 %v159, %v159
  %v162 = vpack.c.b16 %v160, %v160
  %vm165 = vcmask 257024
  %166 = vst.msk [vmem:[%s9] sm:$0xf] %vm165, %v161
  %167 = vst.msk [vmem:[%s9 + $0x4] sm:$0xf] %vm165, %v162
  %v168 = vld [vmem:[%s5] sm:$0xf]
  %v169 = vld [vmem:[%s5 + $0x4] sm:$0xf]
  %v170 = vld [vmem:[%s5 + $0x8] sm:$0xf]
  %v171 = vld [vmem:[%s5 + $0xc] sm:$0xf]
  %v172 = vld [vmem:[%s6] sm:$0x1]
  %v174 = vlaneseq
  %v175 = vshrl.u32 %v174, 7
  %v176 = vsub.s32 0, %v175
  %v177 = vrot.slane %v172, %v176
  %v183 = vunpack.c.l.b16 %v168
  %v184 = vunpack.c.l.b16 %v169
  %v185 = vunpack.c.l.b16 %v170
  %v186 = vunpack.c.l.b16 %v171
  %v187 = vpack.c.b16 %v184, %v183
  %v188 = vpack.c.b16 %v186, %v185
  %191 = vmatprep.subr.bf16.mxu0 0
  %192 = vmatpush1.bf16.msra.mxu0 %v187
  %193 = vmatprep.subr.bf16.mxu0 0
  %194 = vmatpush1.bf16.msra.mxu0 %v188
  %195 = vmatprep.subr.bf16.mxu0 0
  %196 = vmatpush1.bf16.msra.mxu0 0
  %197 = vmatprep.subr.bf16.mxu0 0
  %198 = vmatpush1.bf16.msra.mxu0 0
  %199 = vmatprep.subr.bf16.mxu0 0
  %200 = vmatpush1.bf16.msra.mxu0 0
  %201 = vmatprep.subr.bf16.mxu0 0
  %202 = vmatpush1.bf16.msra.mxu0 0
  %203 = vmatprep.subr.bf16.mxu0 0
  %204 = vmatpush1.bf16.msra.mxu0 0
  %205 = vmatprep.subr.bf16.mxu0 0
  %206 = vmatpush1.bf16.msra.mxu0 0
  %207 = vmatprep.subr.bf16.mxu0 0
  %208 = vmatpush1.bf16.msra.mxu0 0
  %209 = vmatprep.subr.bf16.mxu0 0
  %210 = vmatpush1.bf16.msra.mxu0 0
  %211 = vmatprep.subr.bf16.mxu0 0
  %212 = vmatpush1.bf16.msra.mxu0 0
  %213 = vmatprep.subr.bf16.mxu0 0
  %214 = vmatpush1.bf16.msra.mxu0 0
  %215 = vmatprep.subr.bf16.mxu0 0
  %216 = vmatpush1.bf16.msra.mxu0 0
  %217 = vmatprep.subr.bf16.mxu0 0
  %218 = vmatpush1.bf16.msra.mxu0 0
  %219 = vmatprep.subr.bf16.mxu0 0
  %220 = vmatpush1.bf16.msra.mxu0 0
  %221 = vmatprep.subr.bf16.mxu0 0
  %222 = vmatpush1.bf16.msra.mxu0 0
  %223 = vmatprep.mubr.bf16.mxu0 0
  %224 = vmatmul.mubr.bf16.gmra.mrb[0].mxu0 %v112
  %v225 = vpop.f32.mrb[0].mxu0
  %v226 = vadd.f32 %v177, %v225
  %v227 = vpop.f32.mrb[0].mxu0
  %v228 = vpop.f32.mrb[0].mxu0
  %v229 = vadd.f32 %v177, %v228
  %v230 = vpop.f32.mrb[0].mxu0
  %231 = vdwg.mxu0
  %v232 = vpack.c.bf16 %v229, %v226
  %v234 = vunpack.c.l.b16 %v232
  %v235 = vunpack.c.h.b16 %v232
  %v236 = vpack.c.b16 %v234, %v234
  %v237 = vpack.c.b16 %v235, %v235
  %240 = vst.msk [vmem:[%s10] sm:$0xf] %vm165, %v236
  %241 = vst.msk [vmem:[%s10 + $0x4] sm:$0xf] %vm165, %v237
  %v242 = vld [vmem:[%s7] sm:$0xf]
  %v243 = vld [vmem:[%s7 + $0x4] sm:$0xf]
  %v244 = vld [vmem:[%s7 + $0x8] sm:$0xf]
  %v245 = vld [vmem:[%s7 + $0xc] sm:$0xf]
  %v246 = vld [vmem:[%s8] sm:$0x1]
  %v248 = vlaneseq
  %v249 = vshrl.u32 %v248, 7
  %v250 = vsub.s32 0, %v249
  %v251 = vrot.slane %v246, %v250
  %v257 = vunpack.c.l.b16 %v242
  %v258 = vunpack.c.l.b16 %v243
  %v259 = vunpack.c.l.b16 %v244
  %v260 = vunpack.c.l.b16 %v245
  %v261 = vpack.c.b16 %v258, %v257
  %v262 = vpack.c.b16 %v260, %v259
  %265 = vmatprep.subr.bf16.mxu0 0
  %266 = vmatpush1.bf16.msra.mxu0 %v261
  %267 = vmatprep.subr.bf16.mxu0 0
  %268 = vmatpush1.bf16.msra.mxu0 %v262
  %269 = vmatprep.subr.bf16.mxu0 0
  %270 = vmatpush1.bf16.msra.mxu0 0
  %271 = vmatprep.subr.bf16.mxu0 0
  %272 = vmatpush1.bf16.msra.mxu0 0
  %273 = vmatprep.subr.bf16.mxu0 0
  %274 = vmatpush1.bf16.msra.mxu0 0
  %275 = vmatprep.subr.bf16.mxu0 0
  %276 = vmatpush1.bf16.msra.mxu0 0
  %277 = vmatprep.subr.bf16.mxu0 0
  %278 = vmatpush1.bf16.msra.mxu0 0
  %279 = vmatprep.subr.bf16.mxu0 0
  %280 = vmatpush1.bf16.msra.mxu0 0
  %281 = vmatprep.subr.bf16.mxu0 0
  %282 = vmatpush1.bf16.msra.mxu0 0
  %283 = vmatprep.subr.bf16.mxu0 0
  %284 = vmatpush1.bf16.msra.mxu0 0
  %285 = vmatprep.subr.bf16.mxu0 0
  %286 = vmatpush1.bf16.msra.mxu0 0
  %287 = vmatprep.subr.bf16.mxu0 0
  %288 = vmatpush1.bf16.msra.mxu0 0
  %289 = vmatprep.subr.bf16.mxu0 0
  %290 = vmatpush1.bf16.msra.mxu0 0
  %291 = vmatprep.subr.bf16.mxu0 0
  %292 = vmatpush1.bf16.msra.mxu0 0
  %293 = vmatprep.subr.bf16.mxu0 0
  %294 = vmatpush1.bf16.msra.mxu0 0
  %295 = vmatprep.subr.bf16.mxu0 0
  %296 = vmatpush1.bf16.msra.mxu0 0
  %297 = vmatprep.mubr.bf16.mxu0 0
  %298 = vmatmul.mubr.bf16.gmra.mrb[0].mxu0 %v112
  %v299 = vpop.f32.mrb[0].mxu0
  %v300 = vadd.f32 %v251, %v299
  %v301 = vpop.f32.mrb[0].mxu0
  %v302 = vpop.f32.mrb[0].mxu0
  %v303 = vadd.f32 %v251, %v302
  %v304 = vpop.f32.mrb[0].mxu0
  %305 = vdwg.mxu0
  %v306 = vpack.c.bf16 %v303, %v300
  %v308 = vunpack.c.l.b16 %v306
  %v309 = vunpack.c.h.b16 %v306
  %v310 = vpack.c.b16 %v308, %v308
  %v311 = vpack.c.b16 %v309, %v309
  %314 = vst.msk [vmem:[%s11] sm:$0xf] %vm165, %v310
  %315 = vst.msk [vmem:[%s11 + $0x4] sm:$0xf] %vm165, %v311
  // Predicated region
  $region38: #{encoder_layer.3} parent=0 // pred_check
    _
  $region39: #{encoder_layer.3} parent=0 // pred_check_branch
    %317 = sbr.rel (0) target = $region41
  $region40: #{encoder_layer.3} parent=0 // pred_region
    _
  $region41: #{encoder_layer.3} parent=0 // pred_fallthru
    _
  // Predicated region
  $region42: #{encoder_layer.3} parent=0 // pred_check
    _
  $region43: #{encoder_layer.3} parent=0 // pred_check_branch
    %319 = sbr.rel (0) target = $region45
  $region44: #{encoder_layer.3} parent=0 // pred_region
    _
  $region45: #{encoder_layer.3} parent=0 // pred_fallthru
    _
  // Predicated region
  $region46: #{encoder_layer.3} parent=0 // pred_check
    _
  $region47: #{encoder_layer.3} parent=0 // pred_check_branch
    %321 = sbr.rel (0) target = $region49
  $region48: #{encoder_layer.3} parent=0 // pred_region
    _
  $region49: #{encoder_layer.3} parent=0 // pred_fallthru
    _
  // Predicated region
  $region50: #{encoder_layer.3} parent=0 // pred_check
    _
  $region51: #{encoder_layer.3} parent=0 // pred_check_branch
    %323 = sbr.rel (0) target = $region53
  $region52: #{encoder_layer.3} parent=0 // pred_region
    _
  $region53: #{encoder_layer.3} parent=0 // pred_fallthru
    _
  // Predicated region
  $region54: #{encoder_layer.3} parent=0 // pred_check
    _
  $region55: #{encoder_layer.3} parent=0 // pred_check_branch
    %325 = sbr.rel (0) target = $region57
  $region56: #{encoder_layer.3} parent=0 // pred_region
    _
  $region57: #{encoder_layer.3} parent=0 // pred_fallthru
    _
  // Predicated region
  $region58: #{encoder_layer.3} parent=0 // pred_check
    _
  $region59: #{encoder_layer.3} parent=0 // pred_check_branch
    %327 = sbr.rel (0) target = $region61
  $region60: #{encoder_layer.3} parent=0 // pred_region
    _
  $region61: #{encoder_layer.3} parent=0 // pred_fallthru
    _

// kernel: encoder_layer.5
$region0: #{encoder_layer.5}
  #allocation0 [shape = 'u32[]', space=smem, size = 0x4, offset = 0x4, fixed_abs, tag = 'smem constant byte address 0x4 - core index']
  #allocation1 [shape = 'u32[144,128]{1,0:T(1,128)}', space=vmem, size = 0x12000, scoped, tag = 'internal scratch']
  #allocation2 [shape = 'bf16[16,32]{1,0:T(16,128)(2,1)}', space=vmem, size = 0x1000, scoped, tag = 'scratch operand']
  #allocation3 [shape = 'f32[16,32]{1,0:T(8,128)}', space=vmem, size = 0x2000, scoped, tag = 'scratch operand']
  %s0 = inlined_call_operand.vmem [shape: f32[16,32], index: 0, kind: input, shape index: {}]
  %s1 = inlined_call_operand.vmem [shape: f32[1,32], index: 1, kind: input, shape index: {}]
  %s2 = inlined_call_operand.vmem [shape: f32[1,32], index: 2, kind: input, shape index: {}]
  %s3 = inlined_call_operand.vmem [shape: bf16[32,64], index: 3, kind: input, shape index: {}]
  %s4 = inlined_call_operand.vmem [shape: f32[1,64], index: 4, kind: input, shape index: {}]
  %s5 = inlined_call_operand.vmem [shape: bf16[64,32], index: 5, kind: input, shape index: {}]
  %s6 = inlined_call_operand.vmem [shape: f32[1,32], index: 6, kind: input, shape index: {}]
  %s7 = inlined_call_operand.hbm [shape: f32[16,32], index: 7, kind: output, shape index: {}]
  %s8 = sld [smem:[#allocation0]]
  $region46: #{encoder_layer.5} parent=0
    _
  %s10 = ssub.s32 1, %s8
  %s11 = scalar_select 0, %s10, %s8
  $region1: #{encoder_layer.5} parent=0
    #allocation4 [shape = 'u8[8192]{0}', space=vmem, size = 0x2000, scoped, tag = 'output window, operand 0, single buffered']
    #allocation5 [shape = 's32[1]{0}', space=sflag, size = 0x4, scoped, tag = 'scoped memory for encoder_layer.5']
    %12 = vsyncpa [#allocation5], 0
    // Predicated region
    $region2: #{encoder_layer.5} parent=1 // pred_check
      _
    $region3: #{encoder_layer.5} parent=1 // pred_check_branch
      %14 = sbr.rel (0) target = $region5
    $region4: #{encoder_layer.5} parent=1 // pred_region
      _
    $region5: #{encoder_layer.5} parent=1 // pred_fallthru
      _
    // Predicated region
    $region6: #{encoder_layer.5} parent=1 // pred_check
      _
    $region7: #{encoder_layer.5} parent=1 // pred_check_branch
      %16 = sbr.rel (0) target = $region9
    $region8: #{encoder_layer.5} parent=1 // pred_region
      _
    $region9: #{encoder_layer.5} parent=1 // pred_fallthru
      _
    // Predicated region
    $region10: #{encoder_layer.5} parent=1 // pred_check
      _
    $region11: #{encoder_layer.5} parent=1 // pred_check_branch
      %18 = sbr.rel (0) target = $region13
    $region12: #{encoder_layer.5} parent=1 // pred_region
      _
    $region13: #{encoder_layer.5} parent=1 // pred_fallthru
      _
    // Predicated region
    $region14: #{encoder_layer.5} parent=1 // pred_check
      _
    $region15: #{encoder_layer.5} parent=1 // pred_check_branch
      %20 = sbr.rel (0) target = $region17
    $region16: #{encoder_layer.5} parent=1 // pred_region
      _
    $region17: #{encoder_layer.5} parent=1 // pred_fallthru
      _
    // Predicated region
    $region18: #{encoder_layer.5} parent=1 // pred_check
      _
    $region19: #{encoder_layer.5} parent=1 // pred_check_branch
      %22 = sbr.rel (0) target = $region21
    $region20: #{encoder_layer.5} parent=1 // pred_region
      _
    $region21: #{encoder_layer.5} parent=1 // pred_fallthru
      _
    // Predicated region
    $region22: #{encoder_layer.5} parent=1 // pred_check
      _
    $region23: #{encoder_layer.5} parent=1 // pred_check_branch
      %24 = sbr.rel (0) target = $region25
    $region24: #{encoder_layer.5} parent=1 // pred_region
      _
    $region25: #{encoder_layer.5} parent=1 // pred_fallthru
      _
    // Predicated region
    $region26: #{encoder_layer.5} parent=1 // pred_check
      _
    $region27: #{encoder_layer.5} parent=1 // pred_check_branch
      %26 = sbr.rel (0) target = $region29
    $region28: #{encoder_layer.5} parent=1 // pred_region
      _
    $region29: #{encoder_layer.5} parent=1 // pred_fallthru
      _
    %p28 = scmp.eq.s32.totalorder 0, 0
    // Predicated region
    $region30: #{encoder_layer.5} parent=1 // pred_check
      %p29 = pneg %p28
    $region31: #{encoder_layer.5} parent=1 // pred_check_branch
      %31 = sbr.rel (%p29) target = $region33
    $region32: #{encoder_layer.5} parent=1 // pred_region
      %v32 = vld [vmem:[%s0] sm:$0xff]
      %v33 = vld [vmem:[%s0 + $0x8] sm:$0xff]
      %v34 = vld [vmem:[%s1] sm:$0x1]
      %v35 = vld [vmem:[%s2] sm:$0x1]
      %vm36 = vcmask 261120
      %v37 = vsel %vm36, %v32, 0.0
      %38 = vadd.xlane.f32.xlu0 %v37
      %v39 = vpop.xlane.xlu0 %38
      %v40 = vsel %vm36, %v33, 0.0
      %41 = vadd.xlane.f32.xlu0 %v40
      %v42 = vpop.xlane.xlu0 %41
      %v43 = vmul.f32 %v32, %v32
      %v44 = vmul.f32 %v33, %v33
      %v45 = vsel %vm36, %v43, 0.0
      %46 = vadd.xlane.f32.xlu0 %v45
      %v47 = vpop.xlane.xlu0 %46
      %v48 = vsel %vm36, %v44, 0.0
      %49 = vadd.xlane.f32.xlu0 %v48
      %v50 = vpop.xlane.xlu0 %49
      %v51 = vmul.f32 %v39, 0.03125
      %v52 = vmul.f32 %v42, 0.03125
      %v53 = vmul.f32 %v47, 0.03125
      %v54 = vmul.f32 %v50, 0.03125
      %v55 = vmul.f32 %v51, %v51
      %v56 = vmul.f32 %v52, %v52
      %v57 = vsub.f32 %v53, %v55
      %v58 = vsub.f32 %v54, %v56
      %v59 = vsub.f32 %v32, %v51
      %v60 = vsub.f32 %v33, %v52
      %v61 = vadd.f32 %v57, 1e-05
      %v62 = vadd.f32 %v58, 1e-05
      %v63 = vrsqrt.pop %v61
      %v64 = vrsqrt.pop %v62
      %v65 = vmul.f32 %v59, %v63
      %v66 = vmul.f32 %v60, %v64
      %v68 = vlaneseq
      %v69 = vshrl.u32 %v68, 7
      %v70 = vsub.s32 0, %v69
      %v71 = vrot.slane %v34, %v70
      %v73 = vmul.f32 %v65, %v71
      %v74 = vmul.f32 %v66, %v71
      %v76 = vlaneseq
      %v77 = vshrl.u32 %v76, 7
      %v78 = vsub.s32 0, %v77
      %v79 = vrot.slane %v35, %v78
      %v81 = vadd.f32 %v73, %v79
      %v82 = vadd.f32 %v74, %v79
      %v83 = vpack.c.bf16 %v82, %v81
      %84 = vst.msk [vmem:[#allocation2] sm:$0xff] %vm36, %v83
      %85 = vst.msk [vmem:[#allocation3] sm:$0xff] %vm36, 0.0
      %86 = vst.msk [vmem:[#allocation3 + $0x8] sm:$0xff] %vm36, 0.0
    $region33: #{encoder_layer.5} parent=1 // pred_fallthru
      _
    %v87 = vld [vmem:[#allocation2] sm:$0xff]
    %v88 = vld [vmem:[%s3] sm:$0xf]
    %v89 = vld [vmem:[%s3 + $0x4] sm:$0xf]
    %v90 = vld [vmem:[%s3 + $0x8] sm:$0xf]
    %v91 = vld [vmem:[%s3 + $0xc] sm:$0xf]
    %v92 = vld [vmem:[%s4] sm:$0x1]
    %v94 = vlaneseq
    %v95 = vshrl.u32 %v94, 7
    %v96 = vsub.s32 0, %v95
    %v97 = vrot.slane %v92, %v96
    %v103 = vunpack.c.l.b16 %v88
    %v104 = vunpack.c.l.b16 %v89
    %v105 = vunpack.c.l.b16 %v90
    %v106 = vunpack.c.l.b16 %v91
    %v107 = vpack.c.b16 %v104, %v103
    %v108 = vpack.c.b16 %v106, %v105
    %vm111 = vcmask 261120
    %v113 = vsel %vm111, %v87, 0
    %115 = vmatprep.subr.bf16.mxu0 0
    %116 = vmatpush1.bf16.msra.mxu0 %v107
    %117 = vmatprep.subr.bf16.mxu0 0
    %118 = vmatpush1.bf16.msra.mxu0 %v108
    %119 = vmatprep.subr.bf16.mxu0 0
    %120 = vmatpush1.bf16.msra.mxu0 0
    %121 = vmatprep.subr.bf16.mxu0 0
    %122 = vmatpush1.bf16.msra.mxu0 0
    %123 = vmatprep.subr.bf16.mxu0 0
    %124 = vmatpush1.bf16.msra.mxu0 0
    %125 = vmatprep.subr.bf16.mxu0 0
    %126 = vmatpush1.bf16.msra.mxu0 0
    %127 = vmatprep.subr.bf16.mxu0 0
    %128 = vmatpush1.bf16.msra.mxu0 0
    %129 = vmatprep.subr.bf16.mxu0 0
    %130 = vmatpush1.bf16.msra.mxu0 0
    %131 = vmatprep.subr.bf16.mxu0 0
    %132 = vmatpush1.bf16.msra.mxu0 0
    %133 = vmatprep.subr.bf16.mxu0 0
    %134 = vmatpush1.bf16.msra.mxu0 0
    %135 = vmatprep.subr.bf16.mxu0 0
    %136 = vmatpush1.bf16.msra.mxu0 0
    %137 = vmatprep.subr.bf16.mxu0 0
    %138 = vmatpush1.bf16.msra.mxu0 0
    %139 = vmatprep.subr.bf16.mxu0 0
    %140 = vmatpush1.bf16.msra.mxu0 0
    %141 = vmatprep.subr.bf16.mxu0 0
    %142 = vmatpush1.bf16.msra.mxu0 0
    %143 = vmatprep.subr.bf16.mxu0 0
    %144 = vmatpush1.bf16.msra.mxu0 0
    %145 = vmatprep.subr.bf16.mxu0 0
    %146 = vmatpush1.bf16.msra.mxu0 0
    %147 = vmatprep.mubr.bf16.mxu0 0
    %148 = vmatmul.mubr.bf16.gmra.mrb[0].mxu0 %v113
    %v149 = vpop.f32.mrb[0].mxu0
    %v150 = vadd.f32 %v97, %v149
    %v151 = vpop.f32.mrb[0].mxu0
    %v152 = vpop.f32.mrb[0].mxu0
    %v153 = vadd.f32 %v97, %v152
    %v154 = vpop.f32.mrb[0].mxu0
    %155 = vdwg.mxu0
    %v156 = vmax.f32 %v150, 0.0
    %v157 = vmax.f32 %v153, 0.0
    %v158 = vld [vmem:[#allocation3] sm:$0xff]
    %v159 = vld [vmem:[#allocation3 + $0x8] sm:$0xff]
    %v160 = vpack.c.bf16 %v157, %v156
    %v161 = vld [vmem:[%s5] sm:$0xf]
    %v162 = vld [vmem:[%s5 + $0x4] sm:$0xf]
    %v163 = vld [vmem:[%s5 + $0x8] sm:$0xf]
    %v164 = vld [vmem:[%s5 + $0xc] sm:$0xf]
    %v165 = vld [vmem:[%s5 + $0x10] sm:$0xf]
    %v166 = vld [vmem:[%s5 + $0x14] sm:$0xf]
    %v167 = vld [vmem:[%s5 + $0x18] sm:$0xf]
    %v168 = vld [vmem:[%s5 + $0x1c] sm:$0xf]
    %v177 = vunpack.c.l.b16 %v161
    %v178 = vunpack.c.l.b16 %v162
    %v179 = vunpack.c.l.b16 %v163
    %v180 = vunpack.c.l.b16 %v164
    %v181 = vunpack.c.l.b16 %v165
    %v182 = vunpack.c.l.b16 %v166
    %v183 = vunpack.c.l.b16 %v167
    %v184 = vunpack.c.l.b16 %v168
    %v185 = vpack.c.b16 %v178, %v177
    %v186 = vpack.c.b16 %v180, %v179
    %v187 = vpack.c.b16 %v182, %v181
    %v188 = vpack.c.b16 %v184, %v183
    %vm193 = vcmask 523264
    %v195 = vsel %vm193, %v160, 0
    %197 = vmatprep.subr.bf16.mxu0 0
    %198 = vmatpush1.bf16.msra.mxu0 %v185
    %199 = vmatprep.subr.bf16.mxu0 0
    %200 = vmatpush1.bf16.msra.mxu0 %v186
    %201 = vmatprep.subr.bf16.mxu0 0
    %202 = vmatpush1.bf16.msra.mxu0 %v187
    %203 = vmatprep.subr.bf16.mxu0 0
    %204 = vmatpush1.bf16.msra.mxu0 %v188
    %205 = vmatprep.subr.bf16.mxu0 0
    %206 = vmatpush1.bf16.msra.mxu0 0
    %207 = vmatprep.subr.bf16.mxu0 0
    %208 = vmatpush1.bf16.msra.mxu0 0
    %209 = vmatprep.subr.bf16.mxu0 0
    %210 = vmatpush1.bf16.msra.mxu0 0
    %211 = vmatprep.subr.bf16.mxu0 0
    %212 = vmatpush1.bf16.msra.mxu0 0
    %213 = vmatprep.subr.bf16.mxu0 0
    %214 = vmatpush1.bf16.msra.mxu0 0
    %215 = vmatprep.subr.bf16.mxu0 0
    %216 = vmatpush1.bf16.msra.mxu0 0
    %217 = vmatprep.subr.bf16.mxu0 0
    %218 = vmatpush1.bf16.msra.mxu0 0
    %219 = vmatprep.subr.bf16.mxu0 0
    %220 = vmatpush1.bf16.msra.mxu0 0
    %221 = vmatprep.subr.bf16.mxu0 0
    %222 = vmatpush1.bf16.msra.mxu0 0
    %223 = vmatprep.subr.bf16.mxu0 0
    %224 = vmatpush1.bf16.msra.mxu0 0
    %225 = vmatprep.subr.bf16.mxu0 0
    %226 = vmatpush1.bf16.msra.mxu0 0
    %227 = vmatprep.subr.bf16.mxu0 0
    %228 = vmatpush1.bf16.msra.mxu0 0
    %229 = vmatprep.mubr.bf16.mxu0 0
    %230 = vmatmul.mubr.bf16.gmra.mrb[0].mxu0 %v195
    %v231 = vpop.f32.mrb[0].mxu0
    %v232 = vadd.f32 0.0, %v231
    %v233 = vpop.f32.mrb[0].mxu0
    %v234 = vpop.f32.mrb[0].mxu0
    %v235 = vadd.f32 0.0, %v234
    %v236 = vpop.f32.mrb[0].mxu0
    %237 = vdwg.mxu0
    %v238 = vadd.f32 %v158, %v232
    %v239 = vadd.f32 %v159, %v235
    %240 = vst.msk [vmem:[#allocation3] sm:$0xff] %vm111, %v238
    %241 = vst.msk [vmem:[#allocation3 + $0x8] sm:$0xff] %vm111, %v239
    // Predicated region
    $region34: #{encoder_layer.5} parent=1 // pred_check
      %p242 = pneg %p28
    $region35: #{encoder_layer.5} parent=1 // pred_check_branch
      %244 = sbr.rel (%p242) target = $region37
    $region36: #{encoder_layer.5} parent=1 // pred_region
      %v245 = vld [vmem:[%s0] sm:$0xff]
      %v246 = vld [vmem:[%s0 + $0x8] sm:$0xff]
      %v247 = vld [vmem:[#allocation3] sm:$0xff]
      %v248 = vld [vmem:[#allocation3 + $0x8] sm:$0xff]
      %v249 = vadd.f32 %v245, %v247
      %v250 = vadd.f32 %v246, %v248
      %v251 = vld [vmem:[%s6] sm:$0x1]
      %v253 = vlaneseq
      %v254 = vshrl.u32 %v253, 7
      %v255 = vsub.s32 0, %v254
      %v256 = vrot.slane %v251, %v255
      %v258 = vadd.f32 %v249, %v256
      %v259 = vadd.f32 %v250, %v256
      %260 = vst.msk [vmem:[#allocation4] sm:$0xff] %vm111, %v258
      %261 = vst.msk [vmem:[#allocation4 + $0x8] sm:$0xff] %vm111, %v259
    $region37: #{encoder_layer.5} parent=1 // pred_fallthru
      _
    // Predicated region
    $region38: #{encoder_layer.5} parent=1 // pred_check
      _
    $region39: #{encoder_layer.5} parent=1 // pred_check_branch
      %263 = sbr.rel (0) target = $region41
    $region40: #{encoder_layer.5} parent=1 // pred_region
      %s265 = ssub.s32 256, 256
      %266 = vsyncadd [#allocation5], %s265
      %s267 = sshll.u32 [#allocation4], 4
      %s268 = int_to_ptr.vmem [resolvable:$true] %s267
      %273 = dma.vmem_to_hbm [thread:$0]  %s268, 256, %s7, [#allocation5], 128, 128, 8
    $region41: #{encoder_layer.5} parent=1 // pred_fallthru
      _
    // Predicated region
    $region42: #{encoder_layer.5} parent=1 // pred_check
      _
    $region43: #{encoder_layer.5} parent=1 // pred_check_branch
      %275 = sbr.rel (0) target = $region45
    $region44: #{encoder_layer.5} parent=1 // pred_region
      %276 = dma.done [#allocation5], 256
    $region45: #{encoder_layer.5} parent=1 // pred_fallthru
      _
    %277 = vsyncpa [#allocation5], 1

</llo_original>
